<compile_context>
chip_gen: v5e
topology: v5e:2x2
jax: 0.10.0
libtpu: 0.0.40
codegen_flags: <defaults>
</compile_context>

<pallas_src>
import jax
import jax.numpy as jnp
from jax.experimental import pallas as pl
from jax.experimental.pallas import tpu as pltpu

EPS = 1e-3  # BatchNorm2d eps=0.001


def _fused_kernel(x_ref, s_ref, w_ref, g_ref, b_ref, o_ref):
    # x_ref: (Cin, M)    bf16 activation, block index constant -> fetched once, resident
    # s_ref: (1, Cin)    f32 per-input-channel multiplier (x504), resident
    # w_ref: (tco, Cin)  bf16 1x1-conv weight chunk for this grid step
    # g_ref: (tco, 1)    f32 BN gamma chunk
    # b_ref: (tco, 1)    f32 BN beta chunk
    # o_ref: (tco, M)    f32 output chunk
    #
    # Fold the per-Cin multiplier into the weight chunk: (W*s) @ X == W @ (s*X),
    # but scaling W touches tco*Cin elements (vs Cin*M for X) and s broadcasts
    # along sublanes of W's lane-major Cin axis.
    ws = (w_ref[...].astype(jnp.float32) * s_ref[...]).astype(jnp.bfloat16)
    y = jnp.dot(ws, x_ref[...], preferred_element_type=jnp.float32)   # MXU, f32 accum

    # Training-mode BatchNorm2d over the pixel (lane) axis, single FMA-style pass.
    m = y.shape[1]
    inv_m = 1.0 / m
    sum_y = jnp.sum(y, axis=1, keepdims=True)
    sum_y2 = jnp.sum(y * y, axis=1, keepdims=True)
    mean = sum_y * inv_m
    var = jnp.maximum(sum_y2 * inv_m - mean * mean, 0.0)   # clamp cancellation noise
    inv = jax.lax.rsqrt(var + EPS)
    a = g_ref[...] * inv
    c = b_ref[...] - a * mean
    o_ref[...] = (a * y + c).astype(o_ref.dtype)


def fused_mul_conv1x1_bn(x_nchw, scale_nc11, w_oihw, gamma, beta, *, num_cout_chunks=2):
    """x_nchw: (N, Cin, H, W); scale_nc11: (1, Cin, 1, 1); w_oihw: (Cout, Cin, 1, 1)."""
    n, cin, h, w = x_nchw.shape
    cout = w_oihw.shape[0]
    m = n * h * w

    # NCHW -> (Cin, M).  For N == 1 this is a pure reshape (no data movement).
    if n == 1:
        x_cm = x_nchw.reshape(cin, h * w)
    else:
        # TODO(synk): N>1 path transposes in HBM and is untested against torch at N>1.
        x_cm = jnp.transpose(x_nchw, (1, 0, 2, 3)).reshape(cin, m)

    # bf16 feeds (f32 accumulation inside the kernel) halve X/W HBM bytes.  In a real
    # graph these casts fuse into the producers / are a one-time weight conversion.
    x_cm = x_cm.astype(jnp.bfloat16)
    w_oc = w_oihw.reshape(cout, cin).astype(jnp.bfloat16)
    s_1c = scale_nc11.reshape(1, cin).astype(jnp.float32)   # lane-major: small VMEM pad
    g_c1 = gamma.reshape(cout, 1).astype(jnp.float32)
    b_c1 = beta.reshape(cout, 1).astype(jnp.float32)

    # Cout tile: 2 chunks of 112 (multiple of 8).  Falls back to a single block if the
    # split is not clean.
    tco = cout
    if (num_cout_chunks > 1 and cout % num_cout_chunks == 0
            and (cout // num_cout_chunks) % 8 == 0):
        tco = cout // num_cout_chunks
    nco = cout // tco

    cost = pl.CostEstimate(
        flops=2 * m * cin * cout + cout * cin,
        transcendentals=cout,                    # one rsqrt per output channel
        bytes_accessed=2 * (cin * m + cout * cin) + 4 * (cout * m + cin + 2 * cout),
    )

    out_cm = pl.pallas_call(
        _fused_kernel,
        out_shape=jax.ShapeDtypeStruct((cout, m), jnp.float32),
        grid=(nco,),
        in_specs=[
            pl.BlockSpec((cin, m), lambda j: (0, 0)),     # X: fetched once, resident
            pl.BlockSpec((1, cin), lambda j: (0, 0)),     # s: resident
            pl.BlockSpec((tco, cin), lambda j: (j, 0)),   # W: per-Cout chunk
            pl.BlockSpec((tco, 1), lambda j: (j, 0)),     # gamma chunk
            pl.BlockSpec((tco, 1), lambda j: (j, 0)),     # beta chunk
        ],
        out_specs=pl.BlockSpec((tco, m), lambda j: (j, 0)),
        compiler_params=pltpu.CompilerParams(
            # Keep on one TensorCore: sharding this latency-bound op across v7x's two
            # cores would duplicate the X read and add HBM traffic.
            dimension_semantics=("arbitrary",)),
        cost_estimate=cost,
    )(x_cm, s_1c, w_oc, g_c1, b_c1)

    # (Cout, M) -> NCHW (free reshape for N == 1).
    if n == 1:
        return out_cm.reshape(1, cout, h, w)
    return jnp.transpose(out_cm.reshape(cout, n, h, w), (1, 0, 2, 3))


# ---------------------------------------------------------------------------
# Pure-JAX references for the self-test.
# ---------------------------------------------------------------------------
def _bn_train(y, gamma, beta):
    mean = jnp.mean(y, axis=(0, 2, 3), keepdims=True)
    var = jnp.mean(jnp.square(y - mean), axis=(0, 2, 3), keepdims=True)
    return (gamma[None, :, None, None] * (y - mean) * jax.lax.rsqrt(var + EPS)
            + beta[None, :, None, None])


def _reference_bf16(x_nchw, scale_nc11, w_oihw, gamma, beta):
    """Same arithmetic as the kernel: bf16-rounded feeds, exact f32 accumulation."""
    cin = x_nchw.shape[1]
    x_b = x_nchw.astype(jnp.bfloat16).astype(jnp.float32)
    w_b = w_oihw[:, :, 0, 0].astype(jnp.bfloat16).astype(jnp.float32)
    s = scale_nc11.reshape(1, cin).astype(jnp.float32)
    ws = (w_b * s).astype(jnp.bfloat16).astype(jnp.float32)
    y = jnp.einsum("nchw,oc->nohw", x_b, ws, precision=jax.lax.Precision.HIGHEST)
    return _bn_train(y, gamma, beta)


def _reference_f32(x_nchw, scale_nc11, w_oihw, gamma, beta):
    """Full-precision reference of the original module: mul -> 1x1 conv -> training BN."""
    y = jnp.einsum("nchw,oc->nohw", x_nchw * scale_nc11, w_oihw[:, :, 0, 0],
                   precision=jax.lax.Precision.HIGHEST)
    return _bn_train(y, gamma, beta)


if __name__ == "__main__":
    N, CIN, H, W = 1, 1344, 14, 14
    COUT = 224

    key = jax.random.PRNGKey(0)
    k1, k2, k3, k4, k5 = jax.random.split(key, 5)

    x499 = jax.random.normal(k1, (N, CIN, H, W), dtype=jnp.float32)
    x504 = jax.random.normal(k2, (1, CIN, 1, 1), dtype=jnp.float32)
    # Conv2d(1344, 224, 1x1, bias=False) weight, deterministic init
    conv_w = jax.random.normal(k3, (COUT, CIN, 1, 1), dtype=jnp.float32) * 0.02
    # BatchNorm2d(224) affine params (deterministic, non-trivial)
    gamma = 1.0 + 0.1 * jax.random.normal(k4, (COUT,), dtype=jnp.float32)
    beta = 0.1 * jax.random.normal(k5, (COUT,), dtype=jnp.float32)

    out = jax.block_until_ready(fused_mul_conv1x1_bn(x499, x504, conv_w, gamma, beta))
    assert out.shape == (N, COUT, H, W)

    # Exact-math check: reference mirrors the kernel's bf16-feed / f32-accumulate math.
    ref_b = jax.block_until_ready(_reference_bf16(x499, x504, conv_w, gamma, beta))
    assert jnp.allclose(out, ref_b, atol=1e-3, rtol=1e-3), "mismatch vs bf16-math reference"

    # Sanity check vs the full-f32 reference of the original module (bf16 feed budget).
    ref_f = jax.block_until_ready(_reference_f32(x499, x504, conv_w, gamma, beta))
    assert jnp.allclose(out, ref_f, atol=5e-2, rtol=5e-2), "mismatch vs f32 reference"

    print("KERNEL_OK")
</pallas_src>

<mosaic_0001>
module attributes {stable_mosaic.version = 11 : i64} {
  func.func @_fused_kernel(%arg0: i32, %arg1: memref<1344x196xbf16, #tpu.memory_space<vmem>>, %arg2: memref<1x1344xf32, #tpu.memory_space<vmem>>, %arg3: memref<112x1344xbf16, #tpu.memory_space<vmem>>, %arg4: memref<112x1xf32, #tpu.memory_space<vmem>>, %arg5: memref<112x1xf32, #tpu.memory_space<vmem>>, %arg6: memref<112x196xf32, #tpu.memory_space<vmem>>) attributes {dimension_semantics = [#tpu.dimension_semantics<arbitrary>], iteration_bounds = array<i64: 2>, scalar_prefetch = 0 : i64, scratch_operands = 0 : i64, tpu.core_type = #tpu.core_type<tc>, window_params = [{pipeline_mode = #tpu.pipeline_mode<synchronous>, transform_indices = @transform_0, window_bounds = array<i64: 1344, 196>}, {pipeline_mode = #tpu.pipeline_mode<synchronous>, transform_indices = @transform_1, window_bounds = array<i64: 1, 1344>}, {transform_indices = @transform_2, window_bounds = array<i64: 112, 1344>}, {transform_indices = @transform_3, window_bounds = array<i64: 112, 1>}, {transform_indices = @transform_4, window_bounds = array<i64: 112, 1>}, {transform_indices = @transform_5, window_bounds = array<i64: 112, 196>}]} {
    %c0 = arith.constant 0 : index
    %c0_0 = arith.constant 0 : index
    %0 = vector.load %arg3[%c0, %c0_0] : memref<112x1344xbf16, #tpu.memory_space<vmem>>, vector<112x1344xbf16>
    %1 = arith.extf %0 : vector<112x1344xbf16> to vector<112x1344xf32>
    %c0_1 = arith.constant 0 : index
    %c0_2 = arith.constant 0 : index
    %2 = vector.load %arg2[%c0_1, %c0_2] : memref<1x1344xf32, #tpu.memory_space<vmem>>, vector<1x1344xf32>
    %3 = vector.broadcast %2 : vector<1x1344xf32> to vector<112x1344xf32>
    %4 = arith.mulf %1, %3 : vector<112x1344xf32>
    %5 = arith.truncf %4 : vector<112x1344xf32> to vector<112x1344xbf16>
    %c0_3 = arith.constant 0 : index
    %c0_4 = arith.constant 0 : index
    %6 = vector.load %arg1[%c0_3, %c0_4] : memref<1344x196xbf16, #tpu.memory_space<vmem>>, vector<1344x196xbf16>
    %cst = arith.constant dense<0.000000e+00> : vector<112x196xf32>
    %7 = tpu.matmul %5, %6, %cst {dimension_numbers = #tpu.dot_dimension_numbers<[1], [0], [0], [1], [0, 0, 1, 1], [], []>} : vector<112x1344xbf16>, vector<1344x196xbf16>, vector<112x196xf32> -> vector<112x196xf32>
    %cst_5 = arith.constant dense<0.000000e+00> : vector<112xf32>
    %8 = vector.multi_reduction <add>, %7, %cst_5 [1] : vector<112x196xf32> to vector<112xf32>
    %9 = vector.shape_cast %8 : vector<112xf32> to vector<112x1xf32>
    %10 = arith.mulf %7, %7 : vector<112x196xf32>
    %cst_6 = arith.constant dense<0.000000e+00> : vector<112xf32>
    %11 = vector.multi_reduction <add>, %10, %cst_6 [1] : vector<112x196xf32> to vector<112xf32>
    %12 = vector.shape_cast %11 : vector<112xf32> to vector<112x1xf32>
    %cst_7 = arith.constant 0.00510204071 : f32
    %13 = vector.broadcast %cst_7 : f32 to vector<112x1xf32>
    %14 = arith.mulf %9, %13 : vector<112x1xf32>
    %cst_8 = arith.constant 0.00510204071 : f32
    %15 = vector.broadcast %cst_8 : f32 to vector<112x1xf32>
    %16 = arith.mulf %12, %15 : vector<112x1xf32>
    %17 = arith.mulf %14, %14 : vector<112x1xf32>
    %18 = arith.subf %16, %17 : vector<112x1xf32>
    %cst_9 = arith.constant 0.000000e+00 : f32
    %19 = vector.broadcast %cst_9 : f32 to vector<112x1xf32>
    %20 = arith.maximumf %18, %19 : vector<112x1xf32>
    %cst_10 = arith.constant 1.000000e-03 : f32
    %21 = vector.broadcast %cst_10 : f32 to vector<112x1xf32>
    %22 = arith.addf %20, %21 : vector<112x1xf32>
    %23 = math.rsqrt %22 : vector<112x1xf32>
    %c0_11 = arith.constant 0 : index
    %c0_12 = arith.constant 0 : index
    %24 = vector.load %arg4[%c0_11, %c0_12] : memref<112x1xf32, #tpu.memory_space<vmem>>, vector<112x1xf32>
    %25 = arith.mulf %24, %23 : vector<112x1xf32>
    %c0_13 = arith.constant 0 : index
    %c0_14 = arith.constant 0 : index
    %26 = vector.load %arg5[%c0_13, %c0_14] : memref<112x1xf32, #tpu.memory_space<vmem>>, vector<112x1xf32>
    %27 = arith.mulf %25, %14 : vector<112x1xf32>
    %28 = arith.subf %26, %27 : vector<112x1xf32>
    %29 = vector.broadcast %25 : vector<112x1xf32> to vector<112x196xf32>
    %30 = arith.mulf %29, %7 : vector<112x196xf32>
    %31 = vector.broadcast %28 : vector<112x1xf32> to vector<112x196xf32>
    %32 = arith.addf %30, %31 : vector<112x196xf32>
    %c0_15 = arith.constant 0 : index
    %c0_16 = arith.constant 0 : index
    %33 = vector.load %arg6[%c0_15, %c0_16] : memref<112x196xf32, #tpu.memory_space<vmem>>, vector<112x196xf32>
    tpu.vector_store %arg6[%c0_15, %c0_16], %32 {strides = array<i32>} : memref<112x196xf32, #tpu.memory_space<vmem>>, vector<112x196xf32>,
    return
  }
  func.func @transform_0(%arg0: i32) -> (i32, i32) {
    %c0_i32 = arith.constant 0 : i32
    %c0_i32_0 = arith.constant 0 : i32
    %c0_i32_1 = arith.constant 0 : i32
    return %c0_i32, %c0_i32_0 : i32, i32
  }
  func.func @transform_1(%arg0: i32) -> (i32, i32) {
    %c0_i32 = arith.constant 0 : i32
    %c0_i32_0 = arith.constant 0 : i32
    %c0_i32_1 = arith.constant 0 : i32
    return %c0_i32, %c0_i32_0 : i32, i32
  }
  func.func @transform_2(%arg0: i32) -> (i32, i32) {
    %c0_i32 = arith.constant 0 : i32
    %c0_i32_0 = arith.constant 0 : i32
    return %arg0, %c0_i32 : i32, i32
  }
  func.func @transform_3(%arg0: i32) -> (i32, i32) {
    %c0_i32 = arith.constant 0 : i32
    %c0_i32_0 = arith.constant 0 : i32
    return %arg0, %c0_i32 : i32, i32
  }
  func.func @transform_4(%arg0: i32) -> (i32, i32) {
    %c0_i32 = arith.constant 0 : i32
    %c0_i32_0 = arith.constant 0 : i32
    return %arg0, %c0_i32 : i32, i32
  }
  func.func @transform_5(%arg0: i32) -> (i32, i32) {
    %c0_i32 = arith.constant 0 : i32
    %c0_i32_0 = arith.constant 0 : i32
    return %arg0, %c0_i32 : i32, i32
  }
}

</mosaic_0001>

<llo_original>
// kernel: tpu_custom_call.1
$region0: #{tpu_custom_call.1}
  #allocation0 [shape = 'u32[]', space=smem, size = 0x4, offset = 0x4, fixed_abs, tag = 'smem constant byte address 0x4 - core index']
  #allocation1 [shape = 'u32[72,128]{1,0:T(1,128)}', space=vmem, size = 0x9000, scoped, tag = 'internal scratch']
  %s0 = inlined_call_operand.vmem [shape: bf16[1344,196], index: 0, kind: input, shape index: {}]
  %s1 = inlined_call_operand.vmem [shape: f32[1,1344], index: 1, kind: input, shape index: {}]
  %s2 = inlined_call_operand.vmem [shape: bf16[224,1344], index: 2, kind: input, shape index: {}]
  %s3 = inlined_call_operand.vmem [shape: f32[224,1], index: 3, kind: input, shape index: {}]
  %s4 = inlined_call_operand.vmem [shape: f32[224,1], index: 4, kind: input, shape index: {}]
  %s5 = inlined_call_operand.vmem [shape: f32[224,196], index: 5, kind: output, shape index: {}]
  %s6 = sld [smem:[#allocation0]]
  $region53: #{tpu_custom_call.1} parent=0
    _
  %s8 = ssub.s32 1, %s6
  %s9 = scalar_select 0, %s8, %s6
  loop: start=0, step=1, limit=4
  $region2: #{tpu_custom_call.1} parent=0 // loop_pre_header
    _
  $region3: #{tpu_custom_call.1} parent=0 // loop_header
    %s11 = sphi 0, %s15
    %p12 = scmp.ge.s32.totalorder %s11, 4
    %s19 = sphi 0, %s19
    %s21 = sphi 0, %s19
    %s22 = sphi 0, %s21
    %s36 = sphi 0, %s22
    %s40 = sphi 0, %s40
    %s42 = sphi 0, %s40
    %s43 = sphi 0, %s42
    %s57 = sphi 0, %s43
    %s63 = sphi 0, %s65
    %s66 = sphi 0, %s63
    %s67 = sphi 0, %s66
    %s83 = sphi 0, %s67
    %s89 = sphi 0, %s91
    %s92 = sphi 0, %s89
    %s93 = sphi 0, %s92
    %s109 = sphi 0, %s93
    %s115 = sphi 0, %s117
    %s118 = sphi 0, %s115
    %s119 = sphi 0, %s118
    %s135 = sphi 0, %s119
    %s141 = sphi 0, %s143
    %s144 = sphi 0, %s141
    %s145 = sphi 0, %s144
    %s161 = sphi 0, %s145
  $region4: #{tpu_custom_call.1} parent=0 // loop_header_branch
    %14 = sbr.rel (%p12) target = $region8
  $region5: #{tpu_custom_call.1} parent=0 // loop_body
    %s16 = ssub.s32 %s11, 1
    %s17 = ssub.s32 %s11, 2
    %s18 = sadd.s32 %s11, 1
    %s20 = sadd.s32 %s19, 1
    %p23 = scmp.eq.s32.totalorder %s11, 1
    %p24 = scmp.ne.s32.totalorder %s19, %s21
    %p25 = scmp.eq.s32.totalorder %s11, 0
    %p26 = por %p24, %p25
    %p27 = scmp.ne.s32.totalorder %s19, %s21
    %p28 = scmp.eq.s32.totalorder %s16, 1
    %p29 = por %p27, %p28
    %p30 = scmp.ne.s32.totalorder %s21, %s22
    %p31 = scmp.eq.s32.totalorder %s16, 0
    %p32 = por %p30, %p31
    %p33 = scmp.ne.s32.totalorder %s21, %s22
    %p34 = scmp.eq.s32.totalorder %s17, 1
    %p35 = por %p33, %p34
    %p37 = scmp.ne.s32.totalorder %s22, %s36
    %p38 = scmp.eq.s32.totalorder %s17, 0
    %p39 = por %p37, %p38
    %s41 = sadd.s32 %s40, 1
    %p44 = scmp.eq.s32.totalorder %s11, 1
    %p45 = scmp.ne.s32.totalorder %s40, %s42
    %p46 = scmp.eq.s32.totalorder %s11, 0
    %p47 = por %p45, %p46
    %p48 = scmp.ne.s32.totalorder %s40, %s42
    %p49 = scmp.eq.s32.totalorder %s16, 1
    %p50 = por %p48, %p49
    %p51 = scmp.ne.s32.totalorder %s42, %s43
    %p52 = scmp.eq.s32.totalorder %s16, 0
    %p53 = por %p51, %p52
    %p54 = scmp.ne.s32.totalorder %s42, %s43
    %p55 = scmp.eq.s32.totalorder %s17, 1
    %p56 = por %p54, %p55
    %p58 = scmp.ne.s32.totalorder %s43, %s57
    %p59 = scmp.eq.s32.totalorder %s17, 0
    %p60 = por %p58, %p59
    %s61 = ssub.s32 %s11, %s18
    %p62 = scmp.eq.s32.totalorder %s61, 0
    %s64 = sadd.s32 %s63, 1
    %s65 = scalar_select %p62, %s63, %s64
    %p68 = pneg %p62
    %p69 = scmp.eq.s32.totalorder %s11, 1
    %p70 = por %p68, %p69
    %p71 = scmp.ne.s32.totalorder %s63, %s66
    %p72 = scmp.eq.s32.totalorder %s11, 0
    %p73 = por %p71, %p72
    %p74 = scmp.ne.s32.totalorder %s63, %s66
    %p75 = scmp.eq.s32.totalorder %s16, 1
    %p76 = por %p74, %p75
    %p77 = scmp.ne.s32.totalorder %s66, %s67
    %p78 = scmp.eq.s32.totalorder %s16, 0
    %p79 = por %p77, %p78
    %p80 = scmp.ne.s32.totalorder %s66, %s67
    %p81 = scmp.eq.s32.totalorder %s17, 1
    %p82 = por %p80, %p81
    %p84 = scmp.ne.s32.totalorder %s67, %s83
    %p85 = scmp.eq.s32.totalorder %s17, 0
    %p86 = por %p84, %p85
    %s87 = ssub.s32 %s11, %s18
    %p88 = scmp.eq.s32.totalorder %s87, 0
    %s90 = sadd.s32 %s89, 1
    %s91 = scalar_select %p88, %s89, %s90
    %p94 = pneg %p88
    %p95 = scmp.eq.s32.totalorder %s11, 1
    %p96 = por %p94, %p95
    %p97 = scmp.ne.s32.totalorder %s89, %s92
    %p98 = scmp.eq.s32.totalorder %s11, 0
    %p99 = por %p97, %p98
    %p100 = scmp.ne.s32.totalorder %s89, %s92
    %p101 = scmp.eq.s32.totalorder %s16, 1
    %p102 = por %p100, %p101
    %p103 = scmp.ne.s32.totalorder %s92, %s93
    %p104 = scmp.eq.s32.totalorder %s16, 0
    %p105 = por %p103, %p104
    %p106 = scmp.ne.s32.totalorder %s92, %s93
    %p107 = scmp.eq.s32.totalorder %s17, 1
    %p108 = por %p106, %p107
    %p110 = scmp.ne.s32.totalorder %s93, %s109
    %p111 = scmp.eq.s32.totalorder %s17, 0
    %p112 = por %p110, %p111
    %s113 = ssub.s32 %s11, %s18
    %p114 = scmp.eq.s32.totalorder %s113, 0
    %s116 = sadd.s32 %s115, 1
    %s117 = scalar_select %p114, %s115, %s116
    %p120 = pneg %p114
    %p121 = scmp.eq.s32.totalorder %s11, 1
    %p122 = por %p120, %p121
    %p123 = scmp.ne.s32.totalorder %s115, %s118
    %p124 = scmp.eq.s32.totalorder %s11, 0
    %p125 = por %p123, %p124
    %p126 = scmp.ne.s32.totalorder %s115, %s118
    %p127 = scmp.eq.s32.totalorder %s16, 1
    %p128 = por %p126, %p127
    %p129 = scmp.ne.s32.totalorder %s118, %s119
    %p130 = scmp.eq.s32.totalorder %s16, 0
    %p131 = por %p129, %p130
    %p132 = scmp.ne.s32.totalorder %s118, %s119
    %p133 = scmp.eq.s32.totalorder %s17, 1
    %p134 = por %p132, %p133
    %p136 = scmp.ne.s32.totalorder %s119, %s135
    %p137 = scmp.eq.s32.totalorder %s17, 0
    %p138 = por %p136, %p137
    %s139 = ssub.s32 %s11, %s18
    %p140 = scmp.eq.s32.totalorder %s139, 0
    %s142 = sadd.s32 %s141, 1
    %s143 = scalar_select %p140, %s141, %s142
    %p146 = pneg %p140
    %p147 = scmp.eq.s32.totalorder %s11, 1
    %p148 = por %p146, %p147
    %p149 = scmp.ne.s32.totalorder %s141, %s144
    %p150 = scmp.eq.s32.totalorder %s11, 0
    %p151 = por %p149, %p150
    %p152 = scmp.ne.s32.totalorder %s141, %s144
    %p153 = scmp.eq.s32.totalorder %s16, 1
    %p154 = por %p152, %p153
    %p155 = scmp.ne.s32.totalorder %s144, %s145
    %p156 = scmp.eq.s32.totalorder %s16, 0
    %p157 = por %p155, %p156
    %p158 = scmp.ne.s32.totalorder %s144, %s145
    %p159 = scmp.eq.s32.totalorder %s17, 1
    %p160 = por %p158, %p159
    %p162 = scmp.ne.s32.totalorder %s145, %s161
    %p163 = scmp.eq.s32.totalorder %s17, 0
    %p164 = por %p162, %p163
    %p165 = scmp.le.s32.totalorder 1, %s11
    %p166 = scmp.lt.s32.totalorder %s11, 3
    %p167 = pnand %p165, %p166
    %p168 = pneg %p167
    // Predicated region
    $region9: #{tpu_custom_call.1} parent=5 // pred_check
      _
    $region10: #{tpu_custom_call.1} parent=5 // pred_check_branch
      %170 = sbr.rel (%p167) target = $region12
    $region11: #{tpu_custom_call.1} parent=5 // pred_region
      %s171 = ssub.s32 %s11, 1
      // Predicated region
      $region13: #{tpu_custom_call.1} parent=11 // pred_check
        %p172 = pneg %p32
      $region14: #{tpu_custom_call.1} parent=11 // pred_check_branch
        %174 = sbr.rel (%p172) target = $region16
      $region15: #{tpu_custom_call.1} parent=11 // pred_region
        _
      $region16: #{tpu_custom_call.1} parent=11 // pred_fallthru
        _
      // Predicated region
      $region17: #{tpu_custom_call.1} parent=11 // pred_check
        %p175 = pneg %p53
      $region18: #{tpu_custom_call.1} parent=11 // pred_check_branch
        %177 = sbr.rel (%p175) target = $region20
      $region19: #{tpu_custom_call.1} parent=11 // pred_region
        _
      $region20: #{tpu_custom_call.1} parent=11 // pred_fallthru
        _
    $region12: #{tpu_custom_call.1} parent=5 // pred_fallthru
      _
    %p178 = scmp.lt.s32.totalorder %s11, 2
    // Predicated region
    $region21: #{tpu_custom_call.1} parent=5 // pred_check
      %p179 = pneg %p178
    $region22: #{tpu_custom_call.1} parent=5 // pred_check_branch
      %181 = sbr.rel (%p179) target = $region24
    $region23: #{tpu_custom_call.1} parent=5 // pred_region
      // Predicated region
      $region25: #{tpu_custom_call.1} parent=23 // pred_check
        %p182 = pneg %p73
      $region26: #{tpu_custom_call.1} parent=23 // pred_check_branch
        %184 = sbr.rel (%p182) target = $region28
      $region27: #{tpu_custom_call.1} parent=23 // pred_region
        %s185 = smul.u32 14, %s11
        %p186 = scmp.lt.s32.totalorder %s185, 27
        %s187 = scalar_select %p186, %s185, 27
        %s188 = smul.addr %s187, 11
        %s189 = smul.addr %s188, 4
        %s190 = scalar_lea.vmem %s2, %s189
        %s191 = smul.u32 14, %s11
      $region28: #{tpu_custom_call.1} parent=23 // pred_fallthru
        _
      // Predicated region
      $region29: #{tpu_custom_call.1} parent=23 // pred_check
        %p192 = pneg %p99
      $region30: #{tpu_custom_call.1} parent=23 // pred_check_branch
        %194 = sbr.rel (%p192) target = $region32
      $region31: #{tpu_custom_call.1} parent=23 // pred_region
        %s195 = smul.u32 14, %s11
        %p196 = scmp.lt.s32.totalorder %s195, 27
        %s197 = scalar_select %p196, %s195, 27
        %s198 = smul.addr %s197, 8
        %s199 = scalar_lea.vmem %s3, %s198
        %s200 = smul.u32 14, %s11
      $region32: #{tpu_custom_call.1} parent=23 // pred_fallthru
        _
      // Predicated region
      $region33: #{tpu_custom_call.1} parent=23 // pred_check
        %p201 = pneg %p125
      $region34: #{tpu_custom_call.1} parent=23 // pred_check_branch
        %203 = sbr.rel (%p201) target = $region36
      $region35: #{tpu_custom_call.1} parent=23 // pred_region
        %s204 = smul.u32 14, %s11
        %p205 = scmp.lt.s32.totalorder %s204, 27
        %s206 = scalar_select %p205, %s204, 27
        %s207 = smul.addr %s206, 8
        %s208 = scalar_lea.vmem %s4, %s207
        %s209 = smul.u32 14, %s11
      $region36: #{tpu_custom_call.1} parent=23 // pred_fallthru
        _
    $region24: #{tpu_custom_call.1} parent=5 // pred_fallthru
      _
    %p210 = scmp.le.s32.totalorder 1, %s11
    %p211 = scmp.lt.s32.totalorder %s11, 3
    %p212 = pnand %p210, %p211
    %p213 = pneg %p212
    // Predicated region
    $region37: #{tpu_custom_call.1} parent=5 // pred_check
      _
    $region38: #{tpu_custom_call.1} parent=5 // pred_check_branch
      %215 = sbr.rel (%p212) target = $region40
    $region39: #{tpu_custom_call.1} parent=5 // pred_region
      %s216 = ssub.s32 %s11, 1
      %p217 = pneg %p32
      %p218 = pneg %p29
      %p219 = pneg %p53
      %p220 = pneg %p50
      %s221 = smul.u32 14, %s16
      %p222 = scmp.lt.s32.totalorder %s221, 27
      %s223 = scalar_select %p222, %s221, 27
      %s224 = smul.addr %s223, 11
      %s225 = smul.addr %s224, 4
      %s226 = scalar_lea.vmem %s2, %s225
      %p227 = pneg %p79
      %p228 = pneg %p76
      %s229 = smul.u32 14, %s16
      %p230 = scmp.lt.s32.totalorder %s229, 27
      %s231 = scalar_select %p230, %s229, 27
      %s232 = smul.addr %s231, 8
      %s233 = scalar_lea.vmem %s3, %s232
      %p234 = pneg %p105
      %p235 = pneg %p102
      %s236 = smul.u32 14, %s16
      %p237 = scmp.lt.s32.totalorder %s236, 27
      %s238 = scalar_select %p237, %s236, 27
      %s239 = smul.addr %s238, 8
      %s240 = scalar_lea.vmem %s4, %s239
      %p241 = pneg %p131
      %p242 = pneg %p128
      %p243 = pneg %p157
      %p244 = pneg %p154
      %s245 = smul.u32 14, %s16
      %p246 = scmp.lt.s32.totalorder %s245, 27
      %s247 = scalar_select %p246, %s245, 27
      %s248 = smul.addr %s247, 2
      %s249 = smul.addr %s248, 8
      %s250 = scalar_lea.vmem %s5, %s249
      %s251 = smul.u32 14, %s16
      %p252 = scmp.lt.s32.totalorder %s251, 27
      %s253 = scalar_select %p252, %s251, 27
      %s254 = smul.addr %s253, 11
      %s255 = smul.addr %s254, 4
      %s256 = scalar_lea.vmem %s2, %s255
      %s257 = smul.u32 14, %s16
      %s258 = smul.u32 14, %s16
      %p259 = scmp.lt.s32.totalorder %s258, 27
      %s260 = scalar_select %p259, %s258, 27
      %s261 = smul.addr %s260, 8
      %s262 = scalar_lea.vmem %s3, %s261
      %s263 = smul.u32 14, %s16
      %s264 = smul.u32 14, %s16
      %p265 = scmp.lt.s32.totalorder %s264, 27
      %s266 = scalar_select %p265, %s264, 27
      %s267 = smul.addr %s266, 8
      %s268 = scalar_lea.vmem %s4, %s267
      %s269 = smul.u32 14, %s16
      %s270 = smul.u32 14, %s16
      %p271 = scmp.lt.s32.totalorder %s270, 27
      %s272 = scalar_select %p271, %s270, 27
      %s273 = smul.addr %s272, 2
      %s274 = smul.addr %s273, 8
      %s275 = scalar_lea.vmem %s5, %s274
      %s276 = smul.u32 14, %s16
      %v278 = vld [vmem:[%s256] sm:$0xff]
      %v279 = vld [vmem:[%s256 + $0x8] sm:$0xff]
      %v280 = vld [vmem:[%s256 + $0x10] sm:$0xff]
      %v281 = vld [vmem:[%s256 + $0x18] sm:$0xff]
      %v282 = vld [vmem:[%s256 + $0x20] sm:$0xff]
      %v283 = vld [vmem:[%s256 + $0x28] sm:$0xf]
      %v284 = vld [vmem:[%s256 + $0x2c] sm:$0xff]
      %v285 = vld [vmem:[%s256 + $0x34] sm:$0xff]
      %v286 = vld [vmem:[%s256 + $0x3c] sm:$0xff]
      %v287 = vld [vmem:[%s256 + $0x44] sm:$0xff]
      %v288 = vld [vmem:[%s256 + $0x4c] sm:$0xff]
      %v289 = vld [vmem:[%s256 + $0x54] sm:$0xf]
      %v290 = vld [vmem:[%s256 + $0x58] sm:$0xff]
      %v291 = vld [vmem:[%s256 + $0x60] sm:$0xff]
      %v292 = vld [vmem:[%s256 + $0x68] sm:$0xff]
      %v293 = vld [vmem:[%s256 + $0x70] sm:$0xff]
      %v294 = vld [vmem:[%s256 + $0x78] sm:$0xff]
      %v295 = vld [vmem:[%s256 + $0x80] sm:$0xf]
      %v296 = vld [vmem:[%s256 + $0x84] sm:$0xff]
      %v297 = vld [vmem:[%s256 + $0x8c] sm:$0xff]
      %v298 = vld [vmem:[%s256 + $0x94] sm:$0xff]
      %v299 = vld [vmem:[%s256 + $0x9c] sm:$0xff]
      %v300 = vld [vmem:[%s256 + $0xa4] sm:$0xff]
      %v301 = vld [vmem:[%s256 + $0xac] sm:$0xf]
      %v302 = vld [vmem:[%s256 + $0xb0] sm:$0xff]
      %v303 = vld [vmem:[%s256 + $0xb8] sm:$0xff]
      %v304 = vld [vmem:[%s256 + $0xc0] sm:$0xff]
      %v305 = vld [vmem:[%s256 + $0xc8] sm:$0xff]
      %v306 = vld [vmem:[%s256 + $0xd0] sm:$0xff]
      %v307 = vld [vmem:[%s256 + $0xd8] sm:$0xf]
      %v308 = vld [vmem:[%s256 + $0xdc] sm:$0xff]
      %v309 = vld [vmem:[%s256 + $0xe4] sm:$0xff]
      %v310 = vld [vmem:[%s256 + $0xec] sm:$0xff]
      %v311 = vld [vmem:[%s256 + $0xf4] sm:$0xff]
      %v312 = vld [vmem:[%s256 + $0xfc] sm:$0xff]
      %v313 = vld [vmem:[%s256 + $0x104] sm:$0xf]
      %v314 = vld [vmem:[%s256 + $0x108] sm:$0xff]
      %v315 = vld [vmem:[%s256 + $0x110] sm:$0xff]
      %v316 = vld [vmem:[%s256 + $0x118] sm:$0xff]
      %v317 = vld [vmem:[%s256 + $0x120] sm:$0xff]
      %v318 = vld [vmem:[%s256 + $0x128] sm:$0xff]
      %v319 = vld [vmem:[%s256 + $0x130] sm:$0xf]
      %v320 = vld [vmem:[%s256 + $0x134] sm:$0xff]
      %v321 = vld [vmem:[%s256 + $0x13c] sm:$0xff]
      %v322 = vld [vmem:[%s256 + $0x144] sm:$0xff]
      %v323 = vld [vmem:[%s256 + $0x14c] sm:$0xff]
      %v324 = vld [vmem:[%s256 + $0x154] sm:$0xff]
      %v325 = vld [vmem:[%s256 + $0x15c] sm:$0xf]
      %v326 = vld [vmem:[%s256 + $0x160] sm:$0xff]
      %v327 = vld [vmem:[%s256 + $0x168] sm:$0xff]
      %v328 = vld [vmem:[%s256 + $0x170] sm:$0xff]
      %v329 = vld [vmem:[%s256 + $0x178] sm:$0xff]
      %v330 = vld [vmem:[%s256 + $0x180] sm:$0xff]
      %v331 = vld [vmem:[%s256 + $0x188] sm:$0xf]
      %v332 = vld [vmem:[%s256 + $0x18c] sm:$0xff]
      %v333 = vld [vmem:[%s256 + $0x194] sm:$0xff]
      %v334 = vld [vmem:[%s256 + $0x19c] sm:$0xff]
      %v335 = vld [vmem:[%s256 + $0x1a4] sm:$0xff]
      %v336 = vld [vmem:[%s256 + $0x1ac] sm:$0xff]
      %v337 = vld [vmem:[%s256 + $0x1b4] sm:$0xf]
      %v338 = vld [vmem:[%s256 + $0x1b8] sm:$0xff]
      %v339 = vld [vmem:[%s256 + $0x1c0] sm:$0xff]
      %v340 = vld [vmem:[%s256 + $0x1c8] sm:$0xff]
      %v341 = vld [vmem:[%s256 + $0x1d0] sm:$0xff]
      %v342 = vld [vmem:[%s256 + $0x1d8] sm:$0xff]
      %v343 = vld [vmem:[%s256 + $0x1e0] sm:$0xf]
      %v344 = vld [vmem:[%s256 + $0x1e4] sm:$0xff]
      %v345 = vld [vmem:[%s256 + $0x1ec] sm:$0xff]
      %v346 = vld [vmem:[%s256 + $0x1f4] sm:$0xff]
      %v347 = vld [vmem:[%s256 + $0x1fc] sm:$0xff]
      %v348 = vld [vmem:[%s256 + $0x204] sm:$0xff]
      %v349 = vld [vmem:[%s256 + $0x20c] sm:$0xf]
      %v350 = vld [vmem:[%s256 + $0x210] sm:$0xff]
      %v351 = vld [vmem:[%s256 + $0x218] sm:$0xff]
      %v352 = vld [vmem:[%s256 + $0x220] sm:$0xff]
      %v353 = vld [vmem:[%s256 + $0x228] sm:$0xff]
      %v354 = vld [vmem:[%s256 + $0x230] sm:$0xff]
      %v355 = vld [vmem:[%s256 + $0x238] sm:$0xf]
      %v356 = vld [vmem:[%s256 + $0x23c] sm:$0xff]
      %v357 = vld [vmem:[%s256 + $0x244] sm:$0xff]
      %v358 = vld [vmem:[%s256 + $0x24c] sm:$0xff]
      %v359 = vld [vmem:[%s256 + $0x254] sm:$0xff]
      %v360 = vld [vmem:[%s256 + $0x25c] sm:$0xff]
      %v361 = vld [vmem:[%s256 + $0x264] sm:$0xf]
      %v362 = vunpack.c.l.bf16 %v278
      %v363 = vunpack.c.h.bf16 %v278
      %v364 = vunpack.c.l.bf16 %v279
      %v365 = vunpack.c.h.bf16 %v279
      %v366 = vunpack.c.l.bf16 %v280
      %v367 = vunpack.c.h.bf16 %v280
      %v368 = vunpack.c.l.bf16 %v281
      %v369 = vunpack.c.h.bf16 %v281
      %v370 = vunpack.c.l.bf16 %v282
      %v371 = vunpack.c.h.bf16 %v282
      %v372 = vunpack.c.l.bf16 %v283
      %v373 = vunpack.c.l.bf16 %v284
      %v374 = vunpack.c.h.bf16 %v284
      %v375 = vunpack.c.l.bf16 %v285
      %v376 = vunpack.c.h.bf16 %v285
      %v377 = vunpack.c.l.bf16 %v286
      %v378 = vunpack.c.h.bf16 %v286
      %v379 = vunpack.c.l.bf16 %v287
      %v380 = vunpack.c.h.bf16 %v287
      %v381 = vunpack.c.l.bf16 %v288
      %v382 = vunpack.c.h.bf16 %v288
      %v383 = vunpack.c.l.bf16 %v289
      %v384 = vunpack.c.l.bf16 %v290
      %v385 = vunpack.c.h.bf16 %v290
      %v386 = vunpack.c.l.bf16 %v291
      %v387 = vunpack.c.h.bf16 %v291
      %v388 = vunpack.c.l.bf16 %v292
      %v389 = vunpack.c.h.bf16 %v292
      %v390 = vunpack.c.l.bf16 %v293
      %v391 = vunpack.c.h.bf16 %v293
      %v392 = vunpack.c.l.bf16 %v294
      %v393 = vunpack.c.h.bf16 %v294
      %v394 = vunpack.c.l.bf16 %v295
      %v395 = vunpack.c.l.bf16 %v296
      %v396 = vunpack.c.h.bf16 %v296
      %v397 = vunpack.c.l.bf16 %v297
      %v398 = vunpack.c.h.bf16 %v297
      %v399 = vunpack.c.l.bf16 %v298
      %v400 = vunpack.c.h.bf16 %v298
      %v401 = vunpack.c.l.bf16 %v299
      %v402 = vunpack.c.h.bf16 %v299
      %v403 = vunpack.c.l.bf16 %v300
      %v404 = vunpack.c.h.bf16 %v300
      %v405 = vunpack.c.l.bf16 %v301
      %v406 = vunpack.c.l.bf16 %v302
      %v407 = vunpack.c.h.bf16 %v302
      %v408 = vunpack.c.l.bf16 %v303
      %v409 = vunpack.c.h.bf16 %v303
      %v410 = vunpack.c.l.bf16 %v304
      %v411 = vunpack.c.h.bf16 %v304
      %v412 = vunpack.c.l.bf16 %v305
      %v413 = vunpack.c.h.bf16 %v305
      %v414 = vunpack.c.l.bf16 %v306
      %v415 = vunpack.c.h.bf16 %v306
      %v416 = vunpack.c.l.bf16 %v307
      %v417 = vunpack.c.l.bf16 %v308
      %v418 = vunpack.c.h.bf16 %v308
      %v419 = vunpack.c.l.bf16 %v309
      %v420 = vunpack.c.h.bf16 %v309
      %v421 = vunpack.c.l.bf16 %v310
      %v422 = vunpack.c.h.bf16 %v310
      %v423 = vunpack.c.l.bf16 %v311
      %v424 = vunpack.c.h.bf16 %v311
      %v425 = vunpack.c.l.bf16 %v312
      %v426 = vunpack.c.h.bf16 %v312
      %v427 = vunpack.c.l.bf16 %v313
      %v428 = vunpack.c.l.bf16 %v314
      %v429 = vunpack.c.h.bf16 %v314
      %v430 = vunpack.c.l.bf16 %v315
      %v431 = vunpack.c.h.bf16 %v315
      %v432 = vunpack.c.l.bf16 %v316
      %v433 = vunpack.c.h.bf16 %v316
      %v434 = vunpack.c.l.bf16 %v317
      %v435 = vunpack.c.h.bf16 %v317
      %v436 = vunpack.c.l.bf16 %v318
      %v437 = vunpack.c.h.bf16 %v318
      %v438 = vunpack.c.l.bf16 %v319
      %v439 = vunpack.c.l.bf16 %v320
      %v440 = vunpack.c.h.bf16 %v320
      %v441 = vunpack.c.l.bf16 %v321
      %v442 = vunpack.c.h.bf16 %v321
      %v443 = vunpack.c.l.bf16 %v322
      %v444 = vunpack.c.h.bf16 %v322
      %v445 = vunpack.c.l.bf16 %v323
      %v446 = vunpack.c.h.bf16 %v323
      %v447 = vunpack.c.l.bf16 %v324
      %v448 = vunpack.c.h.bf16 %v324
      %v449 = vunpack.c.l.bf16 %v325
      %v450 = vunpack.c.l.bf16 %v326
      %v451 = vunpack.c.h.bf16 %v326
      %v452 = vunpack.c.l.bf16 %v327
      %v453 = vunpack.c.h.bf16 %v327
      %v454 = vunpack.c.l.bf16 %v328
      %v455 = vunpack.c.h.bf16 %v328
      %v456 = vunpack.c.l.bf16 %v329
      %v457 = vunpack.c.h.bf16 %v329
      %v458 = vunpack.c.l.bf16 %v330
      %v459 = vunpack.c.h.bf16 %v330
      %v460 = vunpack.c.l.bf16 %v331
      %v461 = vunpack.c.l.bf16 %v332
      %v462 = vunpack.c.h.bf16 %v332
      %v463 = vunpack.c.l.bf16 %v333
      %v464 = vunpack.c.h.bf16 %v333
      %v465 = vunpack.c.l.bf16 %v334
      %v466 = vunpack.c.h.bf16 %v334
      %v467 = vunpack.c.l.bf16 %v335
      %v468 = vunpack.c.h.bf16 %v335
      %v469 = vunpack.c.l.bf16 %v336
      %v470 = vunpack.c.h.bf16 %v336
      %v471 = vunpack.c.l.bf16 %v337
      %v472 = vunpack.c.l.bf16 %v338
      %v473 = vunpack.c.h.bf16 %v338
      %v474 = vunpack.c.l.bf16 %v339
      %v475 = vunpack.c.h.bf16 %v339
      %v476 = vunpack.c.l.bf16 %v340
      %v477 = vunpack.c.h.bf16 %v340
      %v478 = vunpack.c.l.bf16 %v341
      %v479 = vunpack.c.h.bf16 %v341
      %v480 = vunpack.c.l.bf16 %v342
      %v481 = vunpack.c.h.bf16 %v342
      %v482 = vunpack.c.l.bf16 %v343
      %v483 = vunpack.c.l.bf16 %v344
      %v484 = vunpack.c.h.bf16 %v344
      %v485 = vunpack.c.l.bf16 %v345
      %v486 = vunpack.c.h.bf16 %v345
      %v487 = vunpack.c.l.bf16 %v346
      %v488 = vunpack.c.h.bf16 %v346
      %v489 = vunpack.c.l.bf16 %v347
      %v490 = vunpack.c.h.bf16 %v347
      %v491 = vunpack.c.l.bf16 %v348
      %v492 = vunpack.c.h.bf16 %v348
      %v493 = vunpack.c.l.bf16 %v349
      %v494 = vunpack.c.l.bf16 %v350
      %v495 = vunpack.c.h.bf16 %v350
      %v496 = vunpack.c.l.bf16 %v351
      %v497 = vunpack.c.h.bf16 %v351
      %v498 = vunpack.c.l.bf16 %v352
      %v499 = vunpack.c.h.bf16 %v352
      %v500 = vunpack.c.l.bf16 %v353
      %v501 = vunpack.c.h.bf16 %v353
      %v502 = vunpack.c.l.bf16 %v354
      %v503 = vunpack.c.h.bf16 %v354
      %v504 = vunpack.c.l.bf16 %v355
      %v505 = vunpack.c.l.bf16 %v356
      %v506 = vunpack.c.h.bf16 %v356
      %v507 = vunpack.c.l.bf16 %v357
      %v508 = vunpack.c.h.bf16 %v357
      %v509 = vunpack.c.l.bf16 %v358
      %v510 = vunpack.c.h.bf16 %v358
      %v511 = vunpack.c.l.bf16 %v359
      %v512 = vunpack.c.h.bf16 %v359
      %v513 = vunpack.c.l.bf16 %v360
      %v514 = vunpack.c.h.bf16 %v360
      %v515 = vunpack.c.l.bf16 %v361
      %v516 = vld [vmem:[%s1] sm:$0xff]
      %v517 = vld [vmem:[%s1 + $0x8] sm:$0x7]
      %v520 = vperm.slane %v516, 0
      %v521 = vperm.slane %v516, 1
      %v522 = vperm.slane %v516, 2
      %v523 = vperm.slane %v516, 3
      %v524 = vperm.slane %v516, 4
      %v525 = vperm.slane %v516, 5
      %v526 = vperm.slane %v516, 6
      %v527 = vperm.slane %v516, 7
      %v528 = vperm.slane %v517, 0
      %v529 = vperm.slane %v517, 1
      %v530 = vperm.slane %v517, 2
      %v542 = vmul.f32 %v362, %v520
      %v543 = vmul.f32 %v363, %v521
      %v544 = vmul.f32 %v364, %v522
      %v545 = vmul.f32 %v365, %v523
      %v546 = vmul.f32 %v366, %v524
      %v547 = vmul.f32 %v367, %v525
      %v548 = vmul.f32 %v368, %v526
      %v549 = vmul.f32 %v369, %v527
      %v550 = vmul.f32 %v370, %v528
      %v551 = vmul.f32 %v371, %v529
      %v552 = vmul.f32 %v372, %v530
      %v553 = vmul.f32 %v373, %v520
      %v554 = vmul.f32 %v374, %v521
      %v555 = vmul.f32 %v375, %v522
      %v556 = vmul.f32 %v376, %v523
      %v557 = vmul.f32 %v377, %v524
      %v558 = vmul.f32 %v378, %v525
      %v559 = vmul.f32 %v379, %v526
      %v560 = vmul.f32 %v380, %v527
      %v561 = vmul.f32 %v381, %v528
      %v562 = vmul.f32 %v382, %v529
      %v563 = vmul.f32 %v383, %v530
      %v564 = vmul.f32 %v384, %v520
      %v565 = vmul.f32 %v385, %v521
      %v566 = vmul.f32 %v386, %v522
      %v567 = vmul.f32 %v387, %v523
      %v568 = vmul.f32 %v388, %v524
      %v569 = vmul.f32 %v389, %v525
      %v570 = vmul.f32 %v390, %v526
      %v571 = vmul.f32 %v391, %v527
      %v572 = vmul.f32 %v392, %v528
      %v573 = vmul.f32 %v393, %v529
      %v574 = vmul.f32 %v394, %v530
      %v575 = vmul.f32 %v395, %v520
      %v576 = vmul.f32 %v396, %v521
      %v577 = vmul.f32 %v397, %v522
      %v578 = vmul.f32 %v398, %v523
      %v579 = vmul.f32 %v399, %v524
      %v580 = vmul.f32 %v400, %v525
      %v581 = vmul.f32 %v401, %v526
      %v582 = vmul.f32 %v402, %v527
      %v583 = vmul.f32 %v403, %v528
      %v584 = vmul.f32 %v404, %v529
      %v585 = vmul.f32 %v405, %v530
      %v586 = vmul.f32 %v406, %v520
      %v587 = vmul.f32 %v407, %v521
      %v588 = vmul.f32 %v408, %v522
      %v589 = vmul.f32 %v409, %v523
      %v590 = vmul.f32 %v410, %v524
      %v591 = vmul.f32 %v411, %v525
      %v592 = vmul.f32 %v412, %v526
      %v593 = vmul.f32 %v413, %v527
      %v594 = vmul.f32 %v414, %v528
      %v595 = vmul.f32 %v415, %v529
      %v596 = vmul.f32 %v416, %v530
      %v597 = vmul.f32 %v417, %v520
      %v598 = vmul.f32 %v418, %v521
      %v599 = vmul.f32 %v419, %v522
      %v600 = vmul.f32 %v420, %v523
      %v601 = vmul.f32 %v421, %v524
      %v602 = vmul.f32 %v422, %v525
      %v603 = vmul.f32 %v423, %v526
      %v604 = vmul.f32 %v424, %v527
      %v605 = vmul.f32 %v425, %v528
      %v606 = vmul.f32 %v426, %v529
      %v607 = vmul.f32 %v427, %v530
      %v608 = vmul.f32 %v428, %v520
      %v609 = vmul.f32 %v429, %v521
      %v610 = vmul.f32 %v430, %v522
      %v611 = vmul.f32 %v431, %v523
      %v612 = vmul.f32 %v432, %v524
      %v613 = vmul.f32 %v433, %v525
      %v614 = vmul.f32 %v434, %v526
      %v615 = vmul.f32 %v435, %v527
      %v616 = vmul.f32 %v436, %v528
      %v617 = vmul.f32 %v437, %v529
      %v618 = vmul.f32 %v438, %v530
      %v619 = vmul.f32 %v439, %v520
      %v620 = vmul.f32 %v440, %v521
      %v621 = vmul.f32 %v441, %v522
      %v622 = vmul.f32 %v442, %v523
      %v623 = vmul.f32 %v443, %v524
      %v624 = vmul.f32 %v444, %v525
      %v625 = vmul.f32 %v445, %v526
      %v626 = vmul.f32 %v446, %v527
      %v627 = vmul.f32 %v447, %v528
      %v628 = vmul.f32 %v448, %v529
      %v629 = vmul.f32 %v449, %v530
      %v630 = vmul.f32 %v450, %v520
      %v631 = vmul.f32 %v451, %v521
      %v632 = vmul.f32 %v452, %v522
      %v633 = vmul.f32 %v453, %v523
      %v634 = vmul.f32 %v454, %v524
      %v635 = vmul.f32 %v455, %v525
      %v636 = vmul.f32 %v456, %v526
      %v637 = vmul.f32 %v457, %v527
      %v638 = vmul.f32 %v458, %v528
      %v639 = vmul.f32 %v459, %v529
      %v640 = vmul.f32 %v460, %v530
      %v641 = vmul.f32 %v461, %v520
      %v642 = vmul.f32 %v462, %v521
      %v643 = vmul.f32 %v463, %v522
      %v644 = vmul.f32 %v464, %v523
      %v645 = vmul.f32 %v465, %v524
      %v646 = vmul.f32 %v466, %v525
      %v647 = vmul.f32 %v467, %v526
      %v648 = vmul.f32 %v468, %v527
      %v649 = vmul.f32 %v469, %v528
      %v650 = vmul.f32 %v470, %v529
      %v651 = vmul.f32 %v471, %v530
      %v652 = vmul.f32 %v472, %v520
      %v653 = vmul.f32 %v473, %v521
      %v654 = vmul.f32 %v474, %v522
      %v655 = vmul.f32 %v475, %v523
      %v656 = vmul.f32 %v476, %v524
      %v657 = vmul.f32 %v477, %v525
      %v658 = vmul.f32 %v478, %v526
      %v659 = vmul.f32 %v479, %v527
      %v660 = vmul.f32 %v480, %v528
      %v661 = vmul.f32 %v481, %v529
      %v662 = vmul.f32 %v482, %v530
      %v663 = vmul.f32 %v483, %v520
      %v664 = vmul.f32 %v484, %v521
      %v665 = vmul.f32 %v485, %v522
      %v666 = vmul.f32 %v486, %v523
      %v667 = vmul.f32 %v487, %v524
      %v668 = vmul.f32 %v488, %v525
      %v669 = vmul.f32 %v489, %v526
      %v670 = vmul.f32 %v490, %v527
      %v671 = vmul.f32 %v491, %v528
      %v672 = vmul.f32 %v492, %v529
      %v673 = vmul.f32 %v493, %v530
      %v674 = vmul.f32 %v494, %v520
      %v675 = vmul.f32 %v495, %v521
      %v676 = vmul.f32 %v496, %v522
      %v677 = vmul.f32 %v497, %v523
      %v678 = vmul.f32 %v498, %v524
      %v679 = vmul.f32 %v499, %v525
      %v680 = vmul.f32 %v500, %v526
      %v681 = vmul.f32 %v501, %v527
      %v682 = vmul.f32 %v502, %v528
      %v683 = vmul.f32 %v503, %v529
      %v684 = vmul.f32 %v504, %v530
      %v685 = vmul.f32 %v505, %v520
      %v686 = vmul.f32 %v506, %v521
      %v687 = vmul.f32 %v507, %v522
      %v688 = vmul.f32 %v508, %v523
      %v689 = vmul.f32 %v509, %v524
      %v690 = vmul.f32 %v510, %v525
      %v691 = vmul.f32 %v511, %v526
      %v692 = vmul.f32 %v512, %v527
      %v693 = vmul.f32 %v513, %v528
      %v694 = vmul.f32 %v514, %v529
      %v695 = vmul.f32 %v515, %v530
      %v696 = vpack.c.bf16 %v553, %v542
      %v697 = vpack.c.bf16 %v554, %v543
      %v698 = vpack.c.bf16 %v555, %v544
      %v699 = vpack.c.bf16 %v556, %v545
      %v700 = vpack.c.bf16 %v557, %v546
      %v701 = vpack.c.bf16 %v558, %v547
      %v702 = vpack.c.bf16 %v559, %v548
      %v703 = vpack.c.bf16 %v560, %v549
      %v704 = vpack.c.bf16 %v561, %v550
      %v705 = vpack.c.bf16 %v562, %v551
      %v706 = vpack.c.bf16 %v563, %v552
      %v707 = vpack.c.bf16 %v575, %v564
      %v708 = vpack.c.bf16 %v576, %v565
      %v709 = vpack.c.bf16 %v577, %v566
      %v710 = vpack.c.bf16 %v578, %v567
      %v711 = vpack.c.bf16 %v579, %v568
      %v712 = vpack.c.bf16 %v580, %v569
      %v713 = vpack.c.bf16 %v581, %v570
      %v714 = vpack.c.bf16 %v582, %v571
      %v715 = vpack.c.bf16 %v583, %v572
      %v716 = vpack.c.bf16 %v584, %v573
      %v717 = vpack.c.bf16 %v585, %v574
      %v718 = vpack.c.bf16 %v597, %v586
      %v719 = vpack.c.bf16 %v598, %v587
      %v720 = vpack.c.bf16 %v599, %v588
      %v721 = vpack.c.bf16 %v600, %v589
      %v722 = vpack.c.bf16 %v601, %v590
      %v723 = vpack.c.bf16 %v602, %v591
      %v724 = vpack.c.bf16 %v603, %v592
      %v725 = vpack.c.bf16 %v604, %v593
      %v726 = vpack.c.bf16 %v605, %v594
      %v727 = vpack.c.bf16 %v606, %v595
      %v728 = vpack.c.bf16 %v607, %v596
      %v729 = vpack.c.bf16 %v619, %v608
      %v730 = vpack.c.bf16 %v620, %v609
      %v731 = vpack.c.bf16 %v621, %v610
      %v732 = vpack.c.bf16 %v622, %v611
      %v733 = vpack.c.bf16 %v623, %v612
      %v734 = vpack.c.bf16 %v624, %v613
      %v735 = vpack.c.bf16 %v625, %v614
      %v736 = vpack.c.bf16 %v626, %v615
      %v737 = vpack.c.bf16 %v627, %v616
      %v738 = vpack.c.bf16 %v628, %v617
      %v739 = vpack.c.bf16 %v629, %v618
      %v740 = vpack.c.bf16 %v641, %v630
      %v741 = vpack.c.bf16 %v642, %v631
      %v742 = vpack.c.bf16 %v643, %v632
      %v743 = vpack.c.bf16 %v644, %v633
      %v744 = vpack.c.bf16 %v645, %v634
      %v745 = vpack.c.bf16 %v646, %v635
      %v746 = vpack.c.bf16 %v647, %v636
      %v747 = vpack.c.bf16 %v648, %v637
      %v748 = vpack.c.bf16 %v649, %v638
      %v749 = vpack.c.bf16 %v650, %v639
      %v750 = vpack.c.bf16 %v651, %v640
      %v751 = vpack.c.bf16 %v663, %v652
      %v752 = vpack.c.bf16 %v664, %v653
      %v753 = vpack.c.bf16 %v665, %v654
      %v754 = vpack.c.bf16 %v666, %v655
      %v755 = vpack.c.bf16 %v667, %v656
      %v756 = vpack.c.bf16 %v668, %v657
      %v757 = vpack.c.bf16 %v669, %v658
      %v758 = vpack.c.bf16 %v670, %v659
      %v759 = vpack.c.bf16 %v671, %v660
      %v760 = vpack.c.bf16 %v672, %v661
      %v761 = vpack.c.bf16 %v673, %v662
      %v762 = vpack.c.bf16 %v685, %v674
      %v763 = vpack.c.bf16 %v686, %v675
      %v764 = vpack.c.bf16 %v687, %v676
      %v765 = vpack.c.bf16 %v688, %v677
      %v766 = vpack.c.bf16 %v689, %v678
      %v767 = vpack.c.bf16 %v690, %v679
      %v768 = vpack.c.bf16 %v691, %v680
      %v769 = vpack.c.bf16 %v692, %v681
      %v770 = vpack.c.bf16 %v693, %v682
      %v771 = vpack.c.bf16 %v694, %v683
      %v772 = vpack.c.bf16 %v695, %v684
      %v773 = vld [vmem:[%s0] sm:$0xff]
      %v774 = vld [vmem:[%s0 + $0x8] sm:$0xff]
      %v775 = vld [vmem:[%s0 + $0x10] sm:$0xff]
      %v776 = vld [vmem:[%s0 + $0x18] sm:$0xff]
      %v777 = vld [vmem:[%s0 + $0x20] sm:$0xff]
      %v778 = vld [vmem:[%s0 + $0x28] sm:$0xff]
      %v779 = vld [vmem:[%s0 + $0x30] sm:$0xff]
      %v780 = vld [vmem:[%s0 + $0x38] sm:$0xff]
      %v781 = vld [vmem:[%s0 + $0x40] sm:$0xff]
      %v782 = vld [vmem:[%s0 + $0x48] sm:$0xff]
      %v783 = vld [vmem:[%s0 + $0x50] sm:$0xff]
      %v784 = vld [vmem:[%s0 + $0x58] sm:$0xff]
      %v785 = vld [vmem:[%s0 + $0x60] sm:$0xff]
      %v786 = vld [vmem:[%s0 + $0x68] sm:$0xff]
      %v787 = vld [vmem:[%s0 + $0x70] sm:$0xff]
      %v788 = vld [vmem:[%s0 + $0x78] sm:$0xff]
      %v789 = vld [vmem:[%s0 + $0x80] sm:$0xff]
      %v790 = vld [vmem:[%s0 + $0x88] sm:$0xff]
      %v791 = vld [vmem:[%s0 + $0x90] sm:$0xff]
      %v792 = vld [vmem:[%s0 + $0x98] sm:$0xff]
      %v793 = vld [vmem:[%s0 + $0xa0] sm:$0xff]
      %v794 = vld [vmem:[%s0 + $0xa8] sm:$0xff]
      %v795 = vld [vmem:[%s0 + $0xb0] sm:$0xff]
      %v796 = vld [vmem:[%s0 + $0xb8] sm:$0xff]
      %v797 = vld [vmem:[%s0 + $0xc0] sm:$0xff]
      %v798 = vld [vmem:[%s0 + $0xc8] sm:$0xff]
      %v799 = vld [vmem:[%s0 + $0xd0] sm:$0xff]
      %v800 = vld [vmem:[%s0 + $0xd8] sm:$0xff]
      %v801 = vld [vmem:[%s0 + $0xe0] sm:$0xff]
      %v802 = vld [vmem:[%s0 + $0xe8] sm:$0xff]
      %v803 = vld [vmem:[%s0 + $0xf0] sm:$0xff]
      %v804 = vld [vmem:[%s0 + $0xf8] sm:$0xff]
      %v805 = vld [vmem:[%s0 + $0x100] sm:$0xff]
      %v806 = vld [vmem:[%s0 + $0x108] sm:$0xff]
      %v807 = vld [vmem:[%s0 + $0x110] sm:$0xff]
      %v808 = vld [vmem:[%s0 + $0x118] sm:$0xff]
      %v809 = vld [vmem:[%s0 + $0x120] sm:$0xff]
      %v810 = vld [vmem:[%s0 + $0x128] sm:$0xff]
      %v811 = vld [vmem:[%s0 + $0x130] sm:$0xff]
      %v812 = vld [vmem:[%s0 + $0x138] sm:$0xff]
      %v813 = vld [vmem:[%s0 + $0x140] sm:$0xff]
      %v814 = vld [vmem:[%s0 + $0x148] sm:$0xff]
      %v815 = vld [vmem:[%s0 + $0x150] sm:$0xff]
      %v816 = vld [vmem:[%s0 + $0x158] sm:$0xff]
      %v817 = vld [vmem:[%s0 + $0x160] sm:$0xff]
      %v818 = vld [vmem:[%s0 + $0x168] sm:$0xff]
      %v819 = vld [vmem:[%s0 + $0x170] sm:$0xff]
      %v820 = vld [vmem:[%s0 + $0x178] sm:$0xff]
      %v821 = vld [vmem:[%s0 + $0x180] sm:$0xff]
      %v822 = vld [vmem:[%s0 + $0x188] sm:$0xff]
      %v823 = vld [vmem:[%s0 + $0x190] sm:$0xff]
      %v824 = vld [vmem:[%s0 + $0x198] sm:$0xff]
      %v825 = vld [vmem:[%s0 + $0x1a0] sm:$0xff]
      %v826 = vld [vmem:[%s0 + $0x1a8] sm:$0xff]
      %v827 = vld [vmem:[%s0 + $0x1b0] sm:$0xff]
      %v828 = vld [vmem:[%s0 + $0x1b8] sm:$0xff]
      %v829 = vld [vmem:[%s0 + $0x1c0] sm:$0xff]
      %v830 = vld [vmem:[%s0 + $0x1c8] sm:$0xff]
      %v831 = vld [vmem:[%s0 + $0x1d0] sm:$0xff]
      %v832 = vld [vmem:[%s0 + $0x1d8] sm:$0xff]
      %v833 = vld [vmem:[%s0 + $0x1e0] sm:$0xff]
      %v834 = vld [vmem:[%s0 + $0x1e8] sm:$0xff]
      %v835 = vld [vmem:[%s0 + $0x1f0] sm:$0xff]
      %v836 = vld [vmem:[%s0 + $0x1f8] sm:$0xff]
      %v837 = vld [vmem:[%s0 + $0x200] sm:$0xff]
      %v838 = vld [vmem:[%s0 + $0x208] sm:$0xff]
      %v839 = vld [vmem:[%s0 + $0x210] sm:$0xff]
      %v840 = vld [vmem:[%s0 + $0x218] sm:$0xff]
      %v841 = vld [vmem:[%s0 + $0x220] sm:$0xff]
      %v842 = vld [vmem:[%s0 + $0x228] sm:$0xff]
      %v843 = vld [vmem:[%s0 + $0x230] sm:$0xff]
      %v844 = vld [vmem:[%s0 + $0x238] sm:$0xff]
      %v845 = vld [vmem:[%s0 + $0x240] sm:$0xff]
      %v846 = vld [vmem:[%s0 + $0x248] sm:$0xff]
      %v847 = vld [vmem:[%s0 + $0x250] sm:$0xff]
      %v848 = vld [vmem:[%s0 + $0x258] sm:$0xff]
      %v849 = vld [vmem:[%s0 + $0x260] sm:$0xff]
      %v850 = vld [vmem:[%s0 + $0x268] sm:$0xff]
      %v851 = vld [vmem:[%s0 + $0x270] sm:$0xff]
      %v852 = vld [vmem:[%s0 + $0x278] sm:$0xff]
      %v853 = vld [vmem:[%s0 + $0x280] sm:$0xff]
      %v854 = vld [vmem:[%s0 + $0x288] sm:$0xff]
      %v855 = vld [vmem:[%s0 + $0x290] sm:$0xff]
      %v856 = vld [vmem:[%s0 + $0x298] sm:$0xff]
      %v857 = vld [vmem:[%s0 + $0x2a0] sm:$0xff]
      %v858 = vld [vmem:[%s0 + $0x2a8] sm:$0xff]
      %v859 = vld [vmem:[%s0 + $0x2b0] sm:$0xff]
      %v860 = vld [vmem:[%s0 + $0x2b8] sm:$0xff]
      %v861 = vld [vmem:[%s0 + $0x2c0] sm:$0xff]
      %v862 = vld [vmem:[%s0 + $0x2c8] sm:$0xff]
      %v863 = vld [vmem:[%s0 + $0x2d0] sm:$0xff]
      %v864 = vld [vmem:[%s0 + $0x2d8] sm:$0xff]
      %v865 = vld [vmem:[%s0 + $0x2e0] sm:$0xff]
      %v866 = vld [vmem:[%s0 + $0x2e8] sm:$0xff]
      %v867 = vld [vmem:[%s0 + $0x2f0] sm:$0xff]
      %v868 = vld [vmem:[%s0 + $0x2f8] sm:$0xff]
      %v869 = vld [vmem:[%s0 + $0x300] sm:$0xff]
      %v870 = vld [vmem:[%s0 + $0x308] sm:$0xff]
      %v871 = vld [vmem:[%s0 + $0x310] sm:$0xff]
      %v872 = vld [vmem:[%s0 + $0x318] sm:$0xff]
      %v873 = vld [vmem:[%s0 + $0x320] sm:$0xff]
      %v874 = vld [vmem:[%s0 + $0x328] sm:$0xff]
      %v875 = vld [vmem:[%s0 + $0x330] sm:$0xff]
      %v876 = vld [vmem:[%s0 + $0x338] sm:$0xff]
      %v877 = vld [vmem:[%s0 + $0x340] sm:$0xff]
      %v878 = vld [vmem:[%s0 + $0x348] sm:$0xff]
      %v879 = vld [vmem:[%s0 + $0x350] sm:$0xff]
      %v880 = vld [vmem:[%s0 + $0x358] sm:$0xff]
      %v881 = vld [vmem:[%s0 + $0x360] sm:$0xff]
      %v882 = vld [vmem:[%s0 + $0x368] sm:$0xff]
      %v883 = vld [vmem:[%s0 + $0x370] sm:$0xff]
      %v884 = vld [vmem:[%s0 + $0x378] sm:$0xff]
      %v885 = vld [vmem:[%s0 + $0x380] sm:$0xff]
      %v886 = vld [vmem:[%s0 + $0x388] sm:$0xff]
      %v887 = vld [vmem:[%s0 + $0x390] sm:$0xff]
      %v888 = vld [vmem:[%s0 + $0x398] sm:$0xff]
      %v889 = vld [vmem:[%s0 + $0x3a0] sm:$0xff]
      %v890 = vld [vmem:[%s0 + $0x3a8] sm:$0xff]
      %v891 = vld [vmem:[%s0 + $0x3b0] sm:$0xff]
      %v892 = vld [vmem:[%s0 + $0x3b8] sm:$0xff]
      %v893 = vld [vmem:[%s0 + $0x3c0] sm:$0xff]
      %v894 = vld [vmem:[%s0 + $0x3c8] sm:$0xff]
      %v895 = vld [vmem:[%s0 + $0x3d0] sm:$0xff]
      %v896 = vld [vmem:[%s0 + $0x3d8] sm:$0xff]
      %v897 = vld [vmem:[%s0 + $0x3e0] sm:$0xff]
      %v898 = vld [vmem:[%s0 + $0x3e8] sm:$0xff]
      %v899 = vld [vmem:[%s0 + $0x3f0] sm:$0xff]
      %v900 = vld [vmem:[%s0 + $0x3f8] sm:$0xff]
      %v901 = vld [vmem:[%s0 + $0x400] sm:$0xff]
      %v902 = vld [vmem:[%s0 + $0x408] sm:$0xff]
      %v903 = vld [vmem:[%s0 + $0x410] sm:$0xff]
      %v904 = vld [vmem:[%s0 + $0x418] sm:$0xff]
      %v905 = vld [vmem:[%s0 + $0x420] sm:$0xff]
      %v906 = vld [vmem:[%s0 + $0x428] sm:$0xff]
      %v907 = vld [vmem:[%s0 + $0x430] sm:$0xff]
      %v908 = vld [vmem:[%s0 + $0x438] sm:$0xff]
      %v909 = vld [vmem:[%s0 + $0x440] sm:$0xff]
      %v910 = vld [vmem:[%s0 + $0x448] sm:$0xff]
      %v911 = vld [vmem:[%s0 + $0x450] sm:$0xff]
      %v912 = vld [vmem:[%s0 + $0x458] sm:$0xff]
      %v913 = vld [vmem:[%s0 + $0x460] sm:$0xff]
      %v914 = vld [vmem:[%s0 + $0x468] sm:$0xff]
      %v915 = vld [vmem:[%s0 + $0x470] sm:$0xff]
      %v916 = vld [vmem:[%s0 + $0x478] sm:$0xff]
      %v917 = vld [vmem:[%s0 + $0x480] sm:$0xff]
      %v918 = vld [vmem:[%s0 + $0x488] sm:$0xff]
      %v919 = vld [vmem:[%s0 + $0x490] sm:$0xff]
      %v920 = vld [vmem:[%s0 + $0x498] sm:$0xff]
      %v921 = vld [vmem:[%s0 + $0x4a0] sm:$0xff]
      %v922 = vld [vmem:[%s0 + $0x4a8] sm:$0xff]
      %v923 = vld [vmem:[%s0 + $0x4b0] sm:$0xff]
      %v924 = vld [vmem:[%s0 + $0x4b8] sm:$0xff]
      %v925 = vld [vmem:[%s0 + $0x4c0] sm:$0xff]
      %v926 = vld [vmem:[%s0 + $0x4c8] sm:$0xff]
      %v927 = vld [vmem:[%s0 + $0x4d0] sm:$0xff]
      %v928 = vld [vmem:[%s0 + $0x4d8] sm:$0xff]
      %v929 = vld [vmem:[%s0 + $0x4e0] sm:$0xff]
      %v930 = vld [vmem:[%s0 + $0x4e8] sm:$0xff]
      %v931 = vld [vmem:[%s0 + $0x4f0] sm:$0xff]
      %v932 = vld [vmem:[%s0 + $0x4f8] sm:$0xff]
      %v933 = vld [vmem:[%s0 + $0x500] sm:$0xff]
      %v934 = vld [vmem:[%s0 + $0x508] sm:$0xff]
      %v935 = vld [vmem:[%s0 + $0x510] sm:$0xff]
      %v936 = vld [vmem:[%s0 + $0x518] sm:$0xff]
      %v937 = vld [vmem:[%s0 + $0x520] sm:$0xff]
      %v938 = vld [vmem:[%s0 + $0x528] sm:$0xff]
      %v939 = vld [vmem:[%s0 + $0x530] sm:$0xff]
      %v940 = vld [vmem:[%s0 + $0x538] sm:$0xff]
      %v1109 = vunpack.c.l.b16 %v773
      %v1110 = vunpack.c.h.b16 %v773
      %v1111 = vunpack.c.l.b16 %v774
      %v1112 = vunpack.c.h.b16 %v774
      %v1113 = vunpack.c.l.b16 %v775
      %v1114 = vunpack.c.h.b16 %v775
      %v1115 = vunpack.c.l.b16 %v776
      %v1116 = vunpack.c.h.b16 %v776
      %v1117 = vunpack.c.l.b16 %v777
      %v1118 = vunpack.c.h.b16 %v777
      %v1119 = vunpack.c.l.b16 %v778
      %v1120 = vunpack.c.h.b16 %v778
      %v1121 = vunpack.c.l.b16 %v779
      %v1122 = vunpack.c.h.b16 %v779
      %v1123 = vunpack.c.l.b16 %v780
      %v1124 = vunpack.c.h.b16 %v780
      %v1125 = vunpack.c.l.b16 %v781
      %v1126 = vunpack.c.h.b16 %v781
      %v1127 = vunpack.c.l.b16 %v782
      %v1128 = vunpack.c.h.b16 %v782
      %v1129 = vunpack.c.l.b16 %v783
      %v1130 = vunpack.c.h.b16 %v783
      %v1131 = vunpack.c.l.b16 %v784
      %v1132 = vunpack.c.h.b16 %v784
      %v1133 = vunpack.c.l.b16 %v785
      %v1134 = vunpack.c.h.b16 %v785
      %v1135 = vunpack.c.l.b16 %v786
      %v1136 = vunpack.c.h.b16 %v786
      %v1137 = vunpack.c.l.b16 %v787
      %v1138 = vunpack.c.h.b16 %v787
      %v1139 = vunpack.c.l.b16 %v788
      %v1140 = vunpack.c.h.b16 %v788
      %v1141 = vunpack.c.l.b16 %v789
      %v1142 = vunpack.c.h.b16 %v789
      %v1143 = vunpack.c.l.b16 %v790
      %v1144 = vunpack.c.h.b16 %v790
      %v1145 = vunpack.c.l.b16 %v791
      %v1146 = vunpack.c.h.b16 %v791
      %v1147 = vunpack.c.l.b16 %v792
      %v1148 = vunpack.c.h.b16 %v792
      %v1149 = vunpack.c.l.b16 %v793
      %v1150 = vunpack.c.h.b16 %v793
      %v1151 = vunpack.c.l.b16 %v794
      %v1152 = vunpack.c.h.b16 %v794
      %v1153 = vunpack.c.l.b16 %v795
      %v1154 = vunpack.c.h.b16 %v795
      %v1155 = vunpack.c.l.b16 %v796
      %v1156 = vunpack.c.h.b16 %v796
      %v1157 = vunpack.c.l.b16 %v797
      %v1158 = vunpack.c.h.b16 %v797
      %v1159 = vunpack.c.l.b16 %v798
      %v1160 = vunpack.c.h.b16 %v798
      %v1161 = vunpack.c.l.b16 %v799
      %v1162 = vunpack.c.h.b16 %v799
      %v1163 = vunpack.c.l.b16 %v800
      %v1164 = vunpack.c.h.b16 %v800
      %v1165 = vunpack.c.l.b16 %v801
      %v1166 = vunpack.c.h.b16 %v801
      %v1167 = vunpack.c.l.b16 %v802
      %v1168 = vunpack.c.h.b16 %v802
      %v1169 = vunpack.c.l.b16 %v803
      %v1170 = vunpack.c.h.b16 %v803
      %v1171 = vunpack.c.l.b16 %v804
      %v1172 = vunpack.c.h.b16 %v804
      %v1173 = vunpack.c.l.b16 %v805
      %v1174 = vunpack.c.h.b16 %v805
      %v1175 = vunpack.c.l.b16 %v806
      %v1176 = vunpack.c.h.b16 %v806
      %v1177 = vunpack.c.l.b16 %v807
      %v1178 = vunpack.c.h.b16 %v807
      %v1179 = vunpack.c.l.b16 %v808
      %v1180 = vunpack.c.h.b16 %v808
      %v1181 = vunpack.c.l.b16 %v809
      %v1182 = vunpack.c.h.b16 %v809
      %v1183 = vunpack.c.l.b16 %v810
      %v1184 = vunpack.c.h.b16 %v810
      %v1185 = vunpack.c.l.b16 %v811
      %v1186 = vunpack.c.h.b16 %v811
      %v1187 = vunpack.c.l.b16 %v812
      %v1188 = vunpack.c.h.b16 %v812
      %v1189 = vunpack.c.l.b16 %v813
      %v1190 = vunpack.c.h.b16 %v813
      %v1191 = vunpack.c.l.b16 %v814
      %v1192 = vunpack.c.h.b16 %v814
      %v1193 = vunpack.c.l.b16 %v815
      %v1194 = vunpack.c.h.b16 %v815
      %v1195 = vunpack.c.l.b16 %v816
      %v1196 = vunpack.c.h.b16 %v816
      %v1197 = vunpack.c.l.b16 %v817
      %v1198 = vunpack.c.h.b16 %v817
      %v1199 = vunpack.c.l.b16 %v818
      %v1200 = vunpack.c.h.b16 %v818
      %v1201 = vunpack.c.l.b16 %v819
      %v1202 = vunpack.c.h.b16 %v819
      %v1203 = vunpack.c.l.b16 %v820
      %v1204 = vunpack.c.h.b16 %v820
      %v1205 = vunpack.c.l.b16 %v821
      %v1206 = vunpack.c.h.b16 %v821
      %v1207 = vunpack.c.l.b16 %v822
      %v1208 = vunpack.c.h.b16 %v822
      %v1209 = vunpack.c.l.b16 %v823
      %v1210 = vunpack.c.h.b16 %v823
      %v1211 = vunpack.c.l.b16 %v824
      %v1212 = vunpack.c.h.b16 %v824
      %v1213 = vunpack.c.l.b16 %v825
      %v1214 = vunpack.c.h.b16 %v825
      %v1215 = vunpack.c.l.b16 %v826
      %v1216 = vunpack.c.h.b16 %v826
      %v1217 = vunpack.c.l.b16 %v827
      %v1218 = vunpack.c.h.b16 %v827
      %v1219 = vunpack.c.l.b16 %v828
      %v1220 = vunpack.c.h.b16 %v828
      %v1221 = vunpack.c.l.b16 %v829
      %v1222 = vunpack.c.h.b16 %v829
      %v1223 = vunpack.c.l.b16 %v830
      %v1224 = vunpack.c.h.b16 %v830
      %v1225 = vunpack.c.l.b16 %v831
      %v1226 = vunpack.c.h.b16 %v831
      %v1227 = vunpack.c.l.b16 %v832
      %v1228 = vunpack.c.h.b16 %v832
      %v1229 = vunpack.c.l.b16 %v833
      %v1230 = vunpack.c.h.b16 %v833
      %v1231 = vunpack.c.l.b16 %v834
      %v1232 = vunpack.c.h.b16 %v834
      %v1233 = vunpack.c.l.b16 %v835
      %v1234 = vunpack.c.h.b16 %v835
      %v1235 = vunpack.c.l.b16 %v836
      %v1236 = vunpack.c.h.b16 %v836
      %v1237 = vunpack.c.l.b16 %v837
      %v1238 = vunpack.c.h.b16 %v837
      %v1239 = vunpack.c.l.b16 %v838
      %v1240 = vunpack.c.h.b16 %v838
      %v1241 = vunpack.c.l.b16 %v839
      %v1242 = vunpack.c.h.b16 %v839
      %v1243 = vunpack.c.l.b16 %v840
      %v1244 = vunpack.c.h.b16 %v840
      %v1245 = vunpack.c.l.b16 %v841
      %v1246 = vunpack.c.h.b16 %v841
      %v1247 = vunpack.c.l.b16 %v842
      %v1248 = vunpack.c.h.b16 %v842
      %v1249 = vunpack.c.l.b16 %v843
      %v1250 = vunpack.c.h.b16 %v843
      %v1251 = vunpack.c.l.b16 %v844
      %v1252 = vunpack.c.h.b16 %v844
      %v1253 = vunpack.c.l.b16 %v845
      %v1254 = vunpack.c.h.b16 %v845
      %v1255 = vunpack.c.l.b16 %v846
      %v1256 = vunpack.c.h.b16 %v846
      %v1257 = vunpack.c.l.b16 %v847
      %v1258 = vunpack.c.h.b16 %v847
      %v1259 = vunpack.c.l.b16 %v848
      %v1260 = vunpack.c.h.b16 %v848
      %v1261 = vunpack.c.l.b16 %v849
      %v1262 = vunpack.c.h.b16 %v849
      %v1263 = vunpack.c.l.b16 %v850
      %v1264 = vunpack.c.h.b16 %v850
      %v1265 = vunpack.c.l.b16 %v851
      %v1266 = vunpack.c.h.b16 %v851
      %v1267 = vunpack.c.l.b16 %v852
      %v1268 = vunpack.c.h.b16 %v852
      %v1269 = vunpack.c.l.b16 %v853
      %v1270 = vunpack.c.h.b16 %v853
      %v1271 = vunpack.c.l.b16 %v854
      %v1272 = vunpack.c.h.b16 %v854
      %v1273 = vunpack.c.l.b16 %v855
      %v1274 = vunpack.c.h.b16 %v855
      %v1275 = vunpack.c.l.b16 %v856
      %v1276 = vunpack.c.h.b16 %v856
      %v1277 = vunpack.c.l.b16 %v857
      %v1278 = vunpack.c.h.b16 %v857
      %v1279 = vunpack.c.l.b16 %v858
      %v1280 = vunpack.c.h.b16 %v858
      %v1281 = vunpack.c.l.b16 %v859
      %v1282 = vunpack.c.h.b16 %v859
      %v1283 = vunpack.c.l.b16 %v860
      %v1284 = vunpack.c.h.b16 %v860
      %v1285 = vunpack.c.l.b16 %v861
      %v1286 = vunpack.c.h.b16 %v861
      %v1287 = vunpack.c.l.b16 %v862
      %v1288 = vunpack.c.h.b16 %v862
      %v1289 = vunpack.c.l.b16 %v863
      %v1290 = vunpack.c.h.b16 %v863
      %v1291 = vunpack.c.l.b16 %v864
      %v1292 = vunpack.c.h.b16 %v864
      %v1293 = vunpack.c.l.b16 %v865
      %v1294 = vunpack.c.h.b16 %v865
      %v1295 = vunpack.c.l.b16 %v866
      %v1296 = vunpack.c.h.b16 %v866
      %v1297 = vunpack.c.l.b16 %v867
      %v1298 = vunpack.c.h.b16 %v867
      %v1299 = vunpack.c.l.b16 %v868
      %v1300 = vunpack.c.h.b16 %v868
      %v1301 = vunpack.c.l.b16 %v869
      %v1302 = vunpack.c.h.b16 %v869
      %v1303 = vunpack.c.l.b16 %v870
      %v1304 = vunpack.c.h.b16 %v870
      %v1305 = vunpack.c.l.b16 %v871
      %v1306 = vunpack.c.h.b16 %v871
      %v1307 = vunpack.c.l.b16 %v872
      %v1308 = vunpack.c.h.b16 %v872
      %v1309 = vunpack.c.l.b16 %v873
      %v1310 = vunpack.c.h.b16 %v873
      %v1311 = vunpack.c.l.b16 %v874
      %v1312 = vunpack.c.h.b16 %v874
      %v1313 = vunpack.c.l.b16 %v875
      %v1314 = vunpack.c.h.b16 %v875
      %v1315 = vunpack.c.l.b16 %v876
      %v1316 = vunpack.c.h.b16 %v876
      %v1317 = vunpack.c.l.b16 %v877
      %v1318 = vunpack.c.h.b16 %v877
      %v1319 = vunpack.c.l.b16 %v878
      %v1320 = vunpack.c.h.b16 %v878
      %v1321 = vunpack.c.l.b16 %v879
      %v1322 = vunpack.c.h.b16 %v879
      %v1323 = vunpack.c.l.b16 %v880
      %v1324 = vunpack.c.h.b16 %v880
      %v1325 = vunpack.c.l.b16 %v881
      %v1326 = vunpack.c.h.b16 %v881
      %v1327 = vunpack.c.l.b16 %v882
      %v1328 = vunpack.c.h.b16 %v882
      %v1329 = vunpack.c.l.b16 %v883
      %v1330 = vunpack.c.h.b16 %v883
      %v1331 = vunpack.c.l.b16 %v884
      %v1332 = vunpack.c.h.b16 %v884
      %v1333 = vunpack.c.l.b16 %v885
      %v1334 = vunpack.c.h.b16 %v885
      %v1335 = vunpack.c.l.b16 %v886
      %v1336 = vunpack.c.h.b16 %v886
      %v1337 = vunpack.c.l.b16 %v887
      %v1338 = vunpack.c.h.b16 %v887
      %v1339 = vunpack.c.l.b16 %v888
      %v1340 = vunpack.c.h.b16 %v888
      %v1341 = vunpack.c.l.b16 %v889
      %v1342 = vunpack.c.h.b16 %v889
      %v1343 = vunpack.c.l.b16 %v890
      %v1344 = vunpack.c.h.b16 %v890
      %v1345 = vunpack.c.l.b16 %v891
      %v1346 = vunpack.c.h.b16 %v891
      %v1347 = vunpack.c.l.b16 %v892
      %v1348 = vunpack.c.h.b16 %v892
      %v1349 = vunpack.c.l.b16 %v893
      %v1350 = vunpack.c.h.b16 %v893
      %v1351 = vunpack.c.l.b16 %v894
      %v1352 = vunpack.c.h.b16 %v894
      %v1353 = vunpack.c.l.b16 %v895
      %v1354 = vunpack.c.h.b16 %v895
      %v1355 = vunpack.c.l.b16 %v896
      %v1356 = vunpack.c.h.b16 %v896
      %v1357 = vunpack.c.l.b16 %v897
      %v1358 = vunpack.c.h.b16 %v897
      %v1359 = vunpack.c.l.b16 %v898
      %v1360 = vunpack.c.h.b16 %v898
      %v1361 = vunpack.c.l.b16 %v899
      %v1362 = vunpack.c.h.b16 %v899
      %v1363 = vunpack.c.l.b16 %v900
      %v1364 = vunpack.c.h.b16 %v900
      %v1365 = vunpack.c.l.b16 %v901
      %v1366 = vunpack.c.h.b16 %v901
      %v1367 = vunpack.c.l.b16 %v902
      %v1368 = vunpack.c.h.b16 %v902
      %v1369 = vunpack.c.l.b16 %v903
      %v1370 = vunpack.c.h.b16 %v903
      %v1371 = vunpack.c.l.b16 %v904
      %v1372 = vunpack.c.h.b16 %v904
      %v1373 = vunpack.c.l.b16 %v905
      %v1374 = vunpack.c.h.b16 %v905
      %v1375 = vunpack.c.l.b16 %v906
      %v1376 = vunpack.c.h.b16 %v906
      %v1377 = vunpack.c.l.b16 %v907
      %v1378 = vunpack.c.h.b16 %v907
      %v1379 = vunpack.c.l.b16 %v908
      %v1380 = vunpack.c.h.b16 %v908
      %v1381 = vunpack.c.l.b16 %v909
      %v1382 = vunpack.c.h.b16 %v909
      %v1383 = vunpack.c.l.b16 %v910
      %v1384 = vunpack.c.h.b16 %v910
      %v1385 = vunpack.c.l.b16 %v911
      %v1386 = vunpack.c.h.b16 %v911
      %v1387 = vunpack.c.l.b16 %v912
      %v1388 = vunpack.c.h.b16 %v912
      %v1389 = vunpack.c.l.b16 %v913
      %v1390 = vunpack.c.h.b16 %v913
      %v1391 = vunpack.c.l.b16 %v914
      %v1392 = vunpack.c.h.b16 %v914
      %v1393 = vunpack.c.l.b16 %v915
      %v1394 = vunpack.c.h.b16 %v915
      %v1395 = vunpack.c.l.b16 %v916
      %v1396 = vunpack.c.h.b16 %v916
      %v1397 = vunpack.c.l.b16 %v917
      %v1398 = vunpack.c.h.b16 %v917
      %v1399 = vunpack.c.l.b16 %v918
      %v1400 = vunpack.c.h.b16 %v918
      %v1401 = vunpack.c.l.b16 %v919
      %v1402 = vunpack.c.h.b16 %v919
      %v1403 = vunpack.c.l.b16 %v920
      %v1404 = vunpack.c.h.b16 %v920
      %v1405 = vunpack.c.l.b16 %v921
      %v1406 = vunpack.c.h.b16 %v921
      %v1407 = vunpack.c.l.b16 %v922
      %v1408 = vunpack.c.h.b16 %v922
      %v1409 = vunpack.c.l.b16 %v923
      %v1410 = vunpack.c.h.b16 %v923
      %v1411 = vunpack.c.l.b16 %v924
      %v1412 = vunpack.c.h.b16 %v924
      %v1413 = vunpack.c.l.b16 %v925
      %v1414 = vunpack.c.h.b16 %v925
      %v1415 = vunpack.c.l.b16 %v926
      %v1416 = vunpack.c.h.b16 %v926
      %v1417 = vunpack.c.l.b16 %v927
      %v1418 = vunpack.c.h.b16 %v927
      %v1419 = vunpack.c.l.b16 %v928
      %v1420 = vunpack.c.h.b16 %v928
      %v1421 = vunpack.c.l.b16 %v929
      %v1422 = vunpack.c.h.b16 %v929
      %v1423 = vunpack.c.l.b16 %v930
      %v1424 = vunpack.c.h.b16 %v930
      %v1425 = vunpack.c.l.b16 %v931
      %v1426 = vunpack.c.h.b16 %v931
      %v1427 = vunpack.c.l.b16 %v932
      %v1428 = vunpack.c.h.b16 %v932
      %v1429 = vunpack.c.l.b16 %v933
      %v1430 = vunpack.c.h.b16 %v933
      %v1431 = vunpack.c.l.b16 %v934
      %v1432 = vunpack.c.h.b16 %v934
      %v1433 = vunpack.c.l.b16 %v935
      %v1434 = vunpack.c.h.b16 %v935
      %v1435 = vunpack.c.l.b16 %v936
      %v1436 = vunpack.c.h.b16 %v936
      %v1437 = vunpack.c.l.b16 %v937
      %v1438 = vunpack.c.h.b16 %v937
      %v1439 = vunpack.c.l.b16 %v938
      %v1440 = vunpack.c.h.b16 %v938
      %v1441 = vunpack.c.l.b16 %v939
      %v1442 = vunpack.c.h.b16 %v939
      %v1443 = vunpack.c.l.b16 %v940
      %v1444 = vunpack.c.h.b16 %v940
      %v1445 = vpack.c.b16 %v1111, %v1109
      %v1446 = vpack.c.b16 %v1112, %v1110
      %v1447 = vpack.c.b16 %v1115, %v1113
      %v1448 = vpack.c.b16 %v1116, %v1114
      %v1449 = vpack.c.b16 %v1119, %v1117
      %v1450 = vpack.c.b16 %v1120, %v1118
      %v1451 = vpack.c.b16 %v1123, %v1121
      %v1452 = vpack.c.b16 %v1124, %v1122
      %v1453 = vpack.c.b16 %v1127, %v1125
      %v1454 = vpack.c.b16 %v1128, %v1126
      %v1455 = vpack.c.b16 %v1131, %v1129
      %v1456 = vpack.c.b16 %v1132, %v1130
      %v1457 = vpack.c.b16 %v1135, %v1133
      %v1458 = vpack.c.b16 %v1136, %v1134
      %v1459 = vpack.c.b16 %v1139, %v1137
      %v1460 = vpack.c.b16 %v1140, %v1138
      %v1461 = vpack.c.b16 %v1143, %v1141
      %v1462 = vpack.c.b16 %v1144, %v1142
      %v1463 = vpack.c.b16 %v1147, %v1145
      %v1464 = vpack.c.b16 %v1148, %v1146
      %v1465 = vpack.c.b16 %v1151, %v1149
      %v1466 = vpack.c.b16 %v1152, %v1150
      %v1467 = vpack.c.b16 %v1155, %v1153
      %v1468 = vpack.c.b16 %v1156, %v1154
      %v1469 = vpack.c.b16 %v1159, %v1157
      %v1470 = vpack.c.b16 %v1160, %v1158
      %v1471 = vpack.c.b16 %v1163, %v1161
      %v1472 = vpack.c.b16 %v1164, %v1162
      %v1473 = vpack.c.b16 %v1167, %v1165
      %v1474 = vpack.c.b16 %v1168, %v1166
      %v1475 = vpack.c.b16 %v1171, %v1169
      %v1476 = vpack.c.b16 %v1172, %v1170
      %v1477 = vpack.c.b16 %v1175, %v1173
      %v1478 = vpack.c.b16 %v1176, %v1174
      %v1479 = vpack.c.b16 %v1179, %v1177
      %v1480 = vpack.c.b16 %v1180, %v1178
      %v1481 = vpack.c.b16 %v1183, %v1181
      %v1482 = vpack.c.b16 %v1184, %v1182
      %v1483 = vpack.c.b16 %v1187, %v1185
      %v1484 = vpack.c.b16 %v1188, %v1186
      %v1485 = vpack.c.b16 %v1191, %v1189
      %v1486 = vpack.c.b16 %v1192, %v1190
      %v1487 = vpack.c.b16 %v1195, %v1193
      %v1488 = vpack.c.b16 %v1196, %v1194
      %v1489 = vpack.c.b16 %v1199, %v1197
      %v1490 = vpack.c.b16 %v1200, %v1198
      %v1491 = vpack.c.b16 %v1203, %v1201
      %v1492 = vpack.c.b16 %v1204, %v1202
      %v1493 = vpack.c.b16 %v1207, %v1205
      %v1494 = vpack.c.b16 %v1208, %v1206
      %v1495 = vpack.c.b16 %v1211, %v1209
      %v1496 = vpack.c.b16 %v1212, %v1210
      %v1497 = vpack.c.b16 %v1215, %v1213
      %v1498 = vpack.c.b16 %v1216, %v1214
      %v1499 = vpack.c.b16 %v1219, %v1217
      %v1500 = vpack.c.b16 %v1220, %v1218
      %v1501 = vpack.c.b16 %v1223, %v1221
      %v1502 = vpack.c.b16 %v1224, %v1222
      %v1503 = vpack.c.b16 %v1227, %v1225
      %v1504 = vpack.c.b16 %v1228, %v1226
      %v1505 = vpack.c.b16 %v1231, %v1229
      %v1506 = vpack.c.b16 %v1232, %v1230
      %v1507 = vpack.c.b16 %v1235, %v1233
      %v1508 = vpack.c.b16 %v1236, %v1234
      %v1509 = vpack.c.b16 %v1239, %v1237
      %v1510 = vpack.c.b16 %v1240, %v1238
      %v1511 = vpack.c.b16 %v1243, %v1241
      %v1512 = vpack.c.b16 %v1244, %v1242
      %v1513 = vpack.c.b16 %v1247, %v1245
      %v1514 = vpack.c.b16 %v1248, %v1246
      %v1515 = vpack.c.b16 %v1251, %v1249
      %v1516 = vpack.c.b16 %v1252, %v1250
      %v1517 = vpack.c.b16 %v1255, %v1253
      %v1518 = vpack.c.b16 %v1256, %v1254
      %v1519 = vpack.c.b16 %v1259, %v1257
      %v1520 = vpack.c.b16 %v1260, %v1258
      %v1521 = vpack.c.b16 %v1263, %v1261
      %v1522 = vpack.c.b16 %v1264, %v1262
      %v1523 = vpack.c.b16 %v1267, %v1265
      %v1524 = vpack.c.b16 %v1268, %v1266
      %v1525 = vpack.c.b16 %v1271, %v1269
      %v1526 = vpack.c.b16 %v1272, %v1270
      %v1527 = vpack.c.b16 %v1275, %v1273
      %v1528 = vpack.c.b16 %v1276, %v1274
      %v1529 = vpack.c.b16 %v1279, %v1277
      %v1530 = vpack.c.b16 %v1280, %v1278
      %v1531 = vpack.c.b16 %v1283, %v1281
      %v1532 = vpack.c.b16 %v1284, %v1282
      %v1533 = vpack.c.b16 %v1287, %v1285
      %v1534 = vpack.c.b16 %v1288, %v1286
      %v1535 = vpack.c.b16 %v1291, %v1289
      %v1536 = vpack.c.b16 %v1292, %v1290
      %v1537 = vpack.c.b16 %v1295, %v1293
      %v1538 = vpack.c.b16 %v1296, %v1294
      %v1539 = vpack.c.b16 %v1299, %v1297
      %v1540 = vpack.c.b16 %v1300, %v1298
      %v1541 = vpack.c.b16 %v1303, %v1301
      %v1542 = vpack.c.b16 %v1304, %v1302
      %v1543 = vpack.c.b16 %v1307, %v1305
      %v1544 = vpack.c.b16 %v1308, %v1306
      %v1545 = vpack.c.b16 %v1311, %v1309
      %v1546 = vpack.c.b16 %v1312, %v1310
      %v1547 = vpack.c.b16 %v1315, %v1313
      %v1548 = vpack.c.b16 %v1316, %v1314
      %v1549 = vpack.c.b16 %v1319, %v1317
      %v1550 = vpack.c.b16 %v1320, %v1318
      %v1551 = vpack.c.b16 %v1323, %v1321
      %v1552 = vpack.c.b16 %v1324, %v1322
      %v1553 = vpack.c.b16 %v1327, %v1325
      %v1554 = vpack.c.b16 %v1328, %v1326
      %v1555 = vpack.c.b16 %v1331, %v1329
      %v1556 = vpack.c.b16 %v1332, %v1330
      %v1557 = vpack.c.b16 %v1335, %v1333
      %v1558 = vpack.c.b16 %v1336, %v1334
      %v1559 = vpack.c.b16 %v1339, %v1337
      %v1560 = vpack.c.b16 %v1340, %v1338
      %v1561 = vpack.c.b16 %v1343, %v1341
      %v1562 = vpack.c.b16 %v1344, %v1342
      %v1563 = vpack.c.b16 %v1347, %v1345
      %v1564 = vpack.c.b16 %v1348, %v1346
      %v1565 = vpack.c.b16 %v1351, %v1349
      %v1566 = vpack.c.b16 %v1352, %v1350
      %v1567 = vpack.c.b16 %v1355, %v1353
      %v1568 = vpack.c.b16 %v1356, %v1354
      %v1569 = vpack.c.b16 %v1359, %v1357
      %v1570 = vpack.c.b16 %v1360, %v1358
      %v1571 = vpack.c.b16 %v1363, %v1361
      %v1572 = vpack.c.b16 %v1364, %v1362
      %v1573 = vpack.c.b16 %v1367, %v1365
      %v1574 = vpack.c.b16 %v1368, %v1366
      %v1575 = vpack.c.b16 %v1371, %v1369
      %v1576 = vpack.c.b16 %v1372, %v1370
      %v1577 = vpack.c.b16 %v1375, %v1373
      %v1578 = vpack.c.b16 %v1376, %v1374
      %v1579 = vpack.c.b16 %v1379, %v1377
      %v1580 = vpack.c.b16 %v1380, %v1378
      %v1581 = vpack.c.b16 %v1383, %v1381
      %v1582 = vpack.c.b16 %v1384, %v1382
      %v1583 = vpack.c.b16 %v1387, %v1385
      %v1584 = vpack.c.b16 %v1388, %v1386
      %v1585 = vpack.c.b16 %v1391, %v1389
      %v1586 = vpack.c.b16 %v1392, %v1390
      %v1587 = vpack.c.b16 %v1395, %v1393
      %v1588 = vpack.c.b16 %v1396, %v1394
      %v1589 = vpack.c.b16 %v1399, %v1397
      %v1590 = vpack.c.b16 %v1400, %v1398
      %v1591 = vpack.c.b16 %v1403, %v1401
      %v1592 = vpack.c.b16 %v1404, %v1402
      %v1593 = vpack.c.b16 %v1407, %v1405
      %v1594 = vpack.c.b16 %v1408, %v1406
      %v1595 = vpack.c.b16 %v1411, %v1409
      %v1596 = vpack.c.b16 %v1412, %v1410
      %v1597 = vpack.c.b16 %v1415, %v1413
      %v1598 = vpack.c.b16 %v1416, %v1414
      %v1599 = vpack.c.b16 %v1419, %v1417
      %v1600 = vpack.c.b16 %v1420, %v1418
      %v1601 = vpack.c.b16 %v1423, %v1421
      %v1602 = vpack.c.b16 %v1424, %v1422
      %v1603 = vpack.c.b16 %v1427, %v1425
      %v1604 = vpack.c.b16 %v1428, %v1426
      %v1605 = vpack.c.b16 %v1431, %v1429
      %v1606 = vpack.c.b16 %v1432, %v1430
      %v1607 = vpack.c.b16 %v1435, %v1433
      %v1608 = vpack.c.b16 %v1436, %v1434
      %v1609 = vpack.c.b16 %v1439, %v1437
      %v1610 = vpack.c.b16 %v1440, %v1438
      %v1611 = vpack.c.b16 %v1443, %v1441
      %v1612 = vpack.c.b16 %v1444, %v1442
      %vm1781 = vcmask 523264
      %v1783 = vsel %vm1781, %v706, 0
      %v1786 = vsel %vm1781, %v717, 0
      %v1789 = vsel %vm1781, %v728, 0
      %v1792 = vsel %vm1781, %v739, 0
      %v1795 = vsel %vm1781, %v750, 0
      %v1798 = vsel %vm1781, %v761, 0
      %v1801 = vsel %vm1781, %v772, 0
      %1803 = vmatpush.bf16.msra.mxu0 %v1459
      %1804 = vmatpush.bf16.msra.mxu0 %v1457
      %1805 = vmatpush.bf16.msra.mxu0 %v1455
      %1806 = vmatpush.bf16.msra.mxu0 %v1453
      %1807 = vmatpush.bf16.msra.mxu0 %v1451
      %1808 = vmatpush.bf16.msra.mxu0 %v1449
      %1809 = vmatpush.bf16.msra.mxu0 %v1447
      %1810 = vmatpush.bf16.msra.mxu0 %v1445
      %1811 = vmatmul.bf16.gmra.mxu0 %v696
      %v1812 = vpop.f32.mrf.mxu0
      %v1813 = vadd.f32 0.0, %v1812
      %v1814 = vpop.f32.mrf.mxu0
      %v1815 = vadd.f32 0.0, %v1814
      %1816 = vmatmul.bf16.gmra.mxu0 %v707
      %v1817 = vpop.f32.mrf.mxu0
      %v1818 = vadd.f32 0.0, %v1817
      %v1819 = vpop.f32.mrf.mxu0
      %v1820 = vadd.f32 0.0, %v1819
      %1821 = vmatmul.bf16.gmra.mxu0 %v718
      %v1822 = vpop.f32.mrf.mxu0
      %v1823 = vadd.f32 0.0, %v1822
      %v1824 = vpop.f32.mrf.mxu0
      %v1825 = vadd.f32 0.0, %v1824
      %1826 = vmatmul.bf16.gmra.mxu0 %v729
      %v1827 = vpop.f32.mrf.mxu0
      %v1828 = vadd.f32 0.0, %v1827
      %v1829 = vpop.f32.mrf.mxu0
      %v1830 = vadd.f32 0.0, %v1829
      %1831 = vmatmul.bf16.gmra.mxu0 %v740
      %v1832 = vpop.f32.mrf.mxu0
      %v1833 = vadd.f32 0.0, %v1832
      %v1834 = vpop.f32.mrf.mxu0
      %v1835 = vadd.f32 0.0, %v1834
      %1836 = vmatmul.bf16.gmra.mxu0 %v751
      %v1837 = vpop.f32.mrf.mxu0
      %v1838 = vadd.f32 0.0, %v1837
      %v1839 = vpop.f32.mrf.mxu0
      %v1840 = vadd.f32 0.0, %v1839
      %1841 = vmatmul.bf16.gmra.mxu0 %v762
      %v1842 = vpop.f32.mrf.mxu0
      %v1843 = vadd.f32 0.0, %v1842
      %v1844 = vpop.f32.mrf.mxu0
      %v1845 = vadd.f32 0.0, %v1844
      %1846 = vdwg.mxu0
      %1847 = vmatpush.bf16.msra.mxu0 %v1475
      %1848 = vmatpush.bf16.msra.mxu0 %v1473
      %1849 = vmatpush.bf16.msra.mxu0 %v1471
      %1850 = vmatpush.bf16.msra.mxu0 %v1469
      %1851 = vmatpush.bf16.msra.mxu0 %v1467
      %1852 = vmatpush.bf16.msra.mxu0 %v1465
      %1853 = vmatpush.bf16.msra.mxu0 %v1463
      %1854 = vmatpush.bf16.msra.mxu0 %v1461
      %1855 = vmatmul.bf16.gmra.mxu0 %v697
      %v1856 = vpop.f32.mrf.mxu0
      %v1857 = vadd.f32 %v1813, %v1856
      %v1858 = vpop.f32.mrf.mxu0
      %v1859 = vadd.f32 %v1815, %v1858
      %1860 = vmatmul.bf16.gmra.mxu0 %v708
      %v1861 = vpop.f32.mrf.mxu0
      %v1862 = vadd.f32 %v1818, %v1861
      %v1863 = vpop.f32.mrf.mxu0
      %v1864 = vadd.f32 %v1820, %v1863
      %1865 = vmatmul.bf16.gmra.mxu0 %v719
      %v1866 = vpop.f32.mrf.mxu0
      %v1867 = vadd.f32 %v1823, %v1866
      %v1868 = vpop.f32.mrf.mxu0
      %v1869 = vadd.f32 %v1825, %v1868
      %1870 = vmatmul.bf16.gmra.mxu0 %v730
      %v1871 = vpop.f32.mrf.mxu0
      %v1872 = vadd.f32 %v1828, %v1871
      %v1873 = vpop.f32.mrf.mxu0
      %v1874 = vadd.f32 %v1830, %v1873
      %1875 = vmatmul.bf16.gmra.mxu0 %v741
      %v1876 = vpop.f32.mrf.mxu0
      %v1877 = vadd.f32 %v1833, %v1876
      %v1878 = vpop.f32.mrf.mxu0
      %v1879 = vadd.f32 %v1835, %v1878
      %1880 = vmatmul.bf16.gmra.mxu0 %v752
      %v1881 = vpop.f32.mrf.mxu0
      %v1882 = vadd.f32 %v1838, %v1881
      %v1883 = vpop.f32.mrf.mxu0
      %v1884 = vadd.f32 %v1840, %v1883
      %1885 = vmatmul.bf16.gmra.mxu0 %v763
      %v1886 = vpop.f32.mrf.mxu0
      %v1887 = vadd.f32 %v1843, %v1886
      %v1888 = vpop.f32.mrf.mxu0
      %v1889 = vadd.f32 %v1845, %v1888
      %1890 = vdwg.mxu0
      %1891 = vmatpush.bf16.msra.mxu0 %v1491
      %1892 = vmatpush.bf16.msra.mxu0 %v1489
      %1893 = vmatpush.bf16.msra.mxu0 %v1487
      %1894 = vmatpush.bf16.msra.mxu0 %v1485
      %1895 = vmatpush.bf16.msra.mxu0 %v1483
      %1896 = vmatpush.bf16.msra.mxu0 %v1481
      %1897 = vmatpush.bf16.msra.mxu0 %v1479
      %1898 = vmatpush.bf16.msra.mxu0 %v1477
      %1899 = vmatmul.bf16.gmra.mxu0 %v698
      %v1900 = vpop.f32.mrf.mxu0
      %v1901 = vadd.f32 %v1857, %v1900
      %v1902 = vpop.f32.mrf.mxu0
      %v1903 = vadd.f32 %v1859, %v1902
      %1904 = vmatmul.bf16.gmra.mxu0 %v709
      %v1905 = vpop.f32.mrf.mxu0
      %v1906 = vadd.f32 %v1862, %v1905
      %v1907 = vpop.f32.mrf.mxu0
      %v1908 = vadd.f32 %v1864, %v1907
      %1909 = vmatmul.bf16.gmra.mxu0 %v720
      %v1910 = vpop.f32.mrf.mxu0
      %v1911 = vadd.f32 %v1867, %v1910
      %v1912 = vpop.f32.mrf.mxu0
      %v1913 = vadd.f32 %v1869, %v1912
      %1914 = vmatmul.bf16.gmra.mxu0 %v731
      %v1915 = vpop.f32.mrf.mxu0
      %v1916 = vadd.f32 %v1872, %v1915
      %v1917 = vpop.f32.mrf.mxu0
      %v1918 = vadd.f32 %v1874, %v1917
      %1919 = vmatmul.bf16.gmra.mxu0 %v742
      %v1920 = vpop.f32.mrf.mxu0
      %v1921 = vadd.f32 %v1877, %v1920
      %v1922 = vpop.f32.mrf.mxu0
      %v1923 = vadd.f32 %v1879, %v1922
      %1924 = vmatmul.bf16.gmra.mxu0 %v753
      %v1925 = vpop.f32.mrf.mxu0
      %v1926 = vadd.f32 %v1882, %v1925
      %v1927 = vpop.f32.mrf.mxu0
      %v1928 = vadd.f32 %v1884, %v1927
      %1929 = vmatmul.bf16.gmra.mxu0 %v764
      %v1930 = vpop.f32.mrf.mxu0
      %v1931 = vadd.f32 %v1887, %v1930
      %v1932 = vpop.f32.mrf.mxu0
      %v1933 = vadd.f32 %v1889, %v1932
      %1934 = vdwg.mxu0
      %1935 = vmatpush.bf16.msra.mxu0 %v1507
      %1936 = vmatpush.bf16.msra.mxu0 %v1505
      %1937 = vmatpush.bf16.msra.mxu0 %v1503
      %1938 = vmatpush.bf16.msra.mxu0 %v1501
      %1939 = vmatpush.bf16.msra.mxu0 %v1499
      %1940 = vmatpush.bf16.msra.mxu0 %v1497
      %1941 = vmatpush.bf16.msra.mxu0 %v1495
      %1942 = vmatpush.bf16.msra.mxu0 %v1493
      %1943 = vmatmul.bf16.gmra.mxu0 %v699
      %v1944 = vpop.f32.mrf.mxu0
      %v1945 = vadd.f32 %v1901, %v1944
      %v1946 = vpop.f32.mrf.mxu0
      %v1947 = vadd.f32 %v1903, %v1946
      %1948 = vmatmul.bf16.gmra.mxu0 %v710
      %v1949 = vpop.f32.mrf.mxu0
      %v1950 = vadd.f32 %v1906, %v1949
      %v1951 = vpop.f32.mrf.mxu0
      %v1952 = vadd.f32 %v1908, %v1951
      %1953 = vmatmul.bf16.gmra.mxu0 %v721
      %v1954 = vpop.f32.mrf.mxu0
      %v1955 = vadd.f32 %v1911, %v1954
      %v1956 = vpop.f32.mrf.mxu0
      %v1957 = vadd.f32 %v1913, %v1956
      %1958 = vmatmul.bf16.gmra.mxu0 %v732
      %v1959 = vpop.f32.mrf.mxu0
      %v1960 = vadd.f32 %v1916, %v1959
      %v1961 = vpop.f32.mrf.mxu0
      %v1962 = vadd.f32 %v1918, %v1961
      %1963 = vmatmul.bf16.gmra.mxu0 %v743
      %v1964 = vpop.f32.mrf.mxu0
      %v1965 = vadd.f32 %v1921, %v1964
      %v1966 = vpop.f32.mrf.mxu0
      %v1967 = vadd.f32 %v1923, %v1966
      %1968 = vmatmul.bf16.gmra.mxu0 %v754
      %v1969 = vpop.f32.mrf.mxu0
      %v1970 = vadd.f32 %v1926, %v1969
      %v1971 = vpop.f32.mrf.mxu0
      %v1972 = vadd.f32 %v1928, %v1971
      %1973 = vmatmul.bf16.gmra.mxu0 %v765
      %v1974 = vpop.f32.mrf.mxu0
      %v1975 = vadd.f32 %v1931, %v1974
      %v1976 = vpop.f32.mrf.mxu0
      %v1977 = vadd.f32 %v1933, %v1976
      %1978 = vdwg.mxu0
      %1979 = vmatpush.bf16.msra.mxu0 %v1523
      %1980 = vmatpush.bf16.msra.mxu0 %v1521
      %1981 = vmatpush.bf16.msra.mxu0 %v1519
      %1982 = vmatpush.bf16.msra.mxu0 %v1517
      %1983 = vmatpush.bf16.msra.mxu0 %v1515
      %1984 = vmatpush.bf16.msra.mxu0 %v1513
      %1985 = vmatpush.bf16.msra.mxu0 %v1511
      %1986 = vmatpush.bf16.msra.mxu0 %v1509
      %1987 = vmatmul.bf16.gmra.mxu0 %v700
      %v1988 = vpop.f32.mrf.mxu0
      %v1989 = vadd.f32 %v1945, %v1988
      %v1990 = vpop.f32.mrf.mxu0
      %v1991 = vadd.f32 %v1947, %v1990
      %1992 = vmatmul.bf16.gmra.mxu0 %v711
      %v1993 = vpop.f32.mrf.mxu0
      %v1994 = vadd.f32 %v1950, %v1993
      %v1995 = vpop.f32.mrf.mxu0
      %v1996 = vadd.f32 %v1952, %v1995
      %1997 = vmatmul.bf16.gmra.mxu0 %v722
      %v1998 = vpop.f32.mrf.mxu0
      %v1999 = vadd.f32 %v1955, %v1998
      %v2000 = vpop.f32.mrf.mxu0
      %v2001 = vadd.f32 %v1957, %v2000
      %2002 = vmatmul.bf16.gmra.mxu0 %v733
      %v2003 = vpop.f32.mrf.mxu0
      %v2004 = vadd.f32 %v1960, %v2003
      %v2005 = vpop.f32.mrf.mxu0
      %v2006 = vadd.f32 %v1962, %v2005
      %2007 = vmatmul.bf16.gmra.mxu0 %v744
      %v2008 = vpop.f32.mrf.mxu0
      %v2009 = vadd.f32 %v1965, %v2008
      %v2010 = vpop.f32.mrf.mxu0
      %v2011 = vadd.f32 %v1967, %v2010
      %2012 = vmatmul.bf16.gmra.mxu0 %v755
      %v2013 = vpop.f32.mrf.mxu0
      %v2014 = vadd.f32 %v1970, %v2013
      %v2015 = vpop.f32.mrf.mxu0
      %v2016 = vadd.f32 %v1972, %v2015
      %2017 = vmatmul.bf16.gmra.mxu0 %v766
      %v2018 = vpop.f32.mrf.mxu0
      %v2019 = vadd.f32 %v1975, %v2018
      %v2020 = vpop.f32.mrf.mxu0
      %v2021 = vadd.f32 %v1977, %v2020
      %2022 = vdwg.mxu0
      %2023 = vmatpush.bf16.msra.mxu0 %v1539
      %2024 = vmatpush.bf16.msra.mxu0 %v1537
      %2025 = vmatpush.bf16.msra.mxu0 %v1535
      %2026 = vmatpush.bf16.msra.mxu0 %v1533
      %2027 = vmatpush.bf16.msra.mxu0 %v1531
      %2028 = vmatpush.bf16.msra.mxu0 %v1529
      %2029 = vmatpush.bf16.msra.mxu0 %v1527
      %2030 = vmatpush.bf16.msra.mxu0 %v1525
      %2031 = vmatmul.bf16.gmra.mxu0 %v701
      %v2032 = vpop.f32.mrf.mxu0
      %v2033 = vadd.f32 %v1989, %v2032
      %v2034 = vpop.f32.mrf.mxu0
      %v2035 = vadd.f32 %v1991, %v2034
      %2036 = vmatmul.bf16.gmra.mxu0 %v712
      %v2037 = vpop.f32.mrf.mxu0
      %v2038 = vadd.f32 %v1994, %v2037
      %v2039 = vpop.f32.mrf.mxu0
      %v2040 = vadd.f32 %v1996, %v2039
      %2041 = vmatmul.bf16.gmra.mxu0 %v723
      %v2042 = vpop.f32.mrf.mxu0
      %v2043 = vadd.f32 %v1999, %v2042
      %v2044 = vpop.f32.mrf.mxu0
      %v2045 = vadd.f32 %v2001, %v2044
      %2046 = vmatmul.bf16.gmra.mxu0 %v734
      %v2047 = vpop.f32.mrf.mxu0
      %v2048 = vadd.f32 %v2004, %v2047
      %v2049 = vpop.f32.mrf.mxu0
      %v2050 = vadd.f32 %v2006, %v2049
      %2051 = vmatmul.bf16.gmra.mxu0 %v745
      %v2052 = vpop.f32.mrf.mxu0
      %v2053 = vadd.f32 %v2009, %v2052
      %v2054 = vpop.f32.mrf.mxu0
      %v2055 = vadd.f32 %v2011, %v2054
      %2056 = vmatmul.bf16.gmra.mxu0 %v756
      %v2057 = vpop.f32.mrf.mxu0
      %v2058 = vadd.f32 %v2014, %v2057
      %v2059 = vpop.f32.mrf.mxu0
      %v2060 = vadd.f32 %v2016, %v2059
      %2061 = vmatmul.bf16.gmra.mxu0 %v767
      %v2062 = vpop.f32.mrf.mxu0
      %v2063 = vadd.f32 %v2019, %v2062
      %v2064 = vpop.f32.mrf.mxu0
      %v2065 = vadd.f32 %v2021, %v2064
      %2066 = vdwg.mxu0
      %2067 = vmatpush.bf16.msra.mxu0 %v1555
      %2068 = vmatpush.bf16.msra.mxu0 %v1553
      %2069 = vmatpush.bf16.msra.mxu0 %v1551
      %2070 = vmatpush.bf16.msra.mxu0 %v1549
      %2071 = vmatpush.bf16.msra.mxu0 %v1547
      %2072 = vmatpush.bf16.msra.mxu0 %v1545
      %2073 = vmatpush.bf16.msra.mxu0 %v1543
      %2074 = vmatpush.bf16.msra.mxu0 %v1541
      %2075 = vmatmul.bf16.gmra.mxu0 %v702
      %v2076 = vpop.f32.mrf.mxu0
      %v2077 = vadd.f32 %v2033, %v2076
      %v2078 = vpop.f32.mrf.mxu0
      %v2079 = vadd.f32 %v2035, %v2078
      %2080 = vmatmul.bf16.gmra.mxu0 %v713
      %v2081 = vpop.f32.mrf.mxu0
      %v2082 = vadd.f32 %v2038, %v2081
      %v2083 = vpop.f32.mrf.mxu0
      %v2084 = vadd.f32 %v2040, %v2083
      %2085 = vmatmul.bf16.gmra.mxu0 %v724
      %v2086 = vpop.f32.mrf.mxu0
      %v2087 = vadd.f32 %v2043, %v2086
      %v2088 = vpop.f32.mrf.mxu0
      %v2089 = vadd.f32 %v2045, %v2088
      %2090 = vmatmul.bf16.gmra.mxu0 %v735
      %v2091 = vpop.f32.mrf.mxu0
      %v2092 = vadd.f32 %v2048, %v2091
      %v2093 = vpop.f32.mrf.mxu0
      %v2094 = vadd.f32 %v2050, %v2093
      %2095 = vmatmul.bf16.gmra.mxu0 %v746
      %v2096 = vpop.f32.mrf.mxu0
      %v2097 = vadd.f32 %v2053, %v2096
      %v2098 = vpop.f32.mrf.mxu0
      %v2099 = vadd.f32 %v2055, %v2098
      %2100 = vmatmul.bf16.gmra.mxu0 %v757
      %v2101 = vpop.f32.mrf.mxu0
      %v2102 = vadd.f32 %v2058, %v2101
      %v2103 = vpop.f32.mrf.mxu0
      %v2104 = vadd.f32 %v2060, %v2103
      %2105 = vmatmul.bf16.gmra.mxu0 %v768
      %v2106 = vpop.f32.mrf.mxu0
      %v2107 = vadd.f32 %v2063, %v2106
      %v2108 = vpop.f32.mrf.mxu0
      %v2109 = vadd.f32 %v2065, %v2108
      %2110 = vdwg.mxu0
      %2111 = vmatpush.bf16.msra.mxu0 %v1571
      %2112 = vmatpush.bf16.msra.mxu0 %v1569
      %2113 = vmatpush.bf16.msra.mxu0 %v1567
      %2114 = vmatpush.bf16.msra.mxu0 %v1565
      %2115 = vmatpush.bf16.msra.mxu0 %v1563
      %2116 = vmatpush.bf16.msra.mxu0 %v1561
      %2117 = vmatpush.bf16.msra.mxu0 %v1559
      %2118 = vmatpush.bf16.msra.mxu0 %v1557
      %2119 = vmatmul.bf16.gmra.mxu0 %v703
      %v2120 = vpop.f32.mrf.mxu0
      %v2121 = vadd.f32 %v2077, %v2120
      %v2122 = vpop.f32.mrf.mxu0
      %v2123 = vadd.f32 %v2079, %v2122
      %2124 = vmatmul.bf16.gmra.mxu0 %v714
      %v2125 = vpop.f32.mrf.mxu0
      %v2126 = vadd.f32 %v2082, %v2125
      %v2127 = vpop.f32.mrf.mxu0
      %v2128 = vadd.f32 %v2084, %v2127
      %2129 = vmatmul.bf16.gmra.mxu0 %v725
      %v2130 = vpop.f32.mrf.mxu0
      %v2131 = vadd.f32 %v2087, %v2130
      %v2132 = vpop.f32.mrf.mxu0
      %v2133 = vadd.f32 %v2089, %v2132
      %2134 = vmatmul.bf16.gmra.mxu0 %v736
      %v2135 = vpop.f32.mrf.mxu0
      %v2136 = vadd.f32 %v2092, %v2135
      %v2137 = vpop.f32.mrf.mxu0
      %v2138 = vadd.f32 %v2094, %v2137
      %2139 = vmatmul.bf16.gmra.mxu0 %v747
      %v2140 = vpop.f32.mrf.mxu0
      %v2141 = vadd.f32 %v2097, %v2140
      %v2142 = vpop.f32.mrf.mxu0
      %v2143 = vadd.f32 %v2099, %v2142
      %2144 = vmatmul.bf16.gmra.mxu0 %v758
      %v2145 = vpop.f32.mrf.mxu0
      %v2146 = vadd.f32 %v2102, %v2145
      %v2147 = vpop.f32.mrf.mxu0
      %v2148 = vadd.f32 %v2104, %v2147
      %2149 = vmatmul.bf16.gmra.mxu0 %v769
      %v2150 = vpop.f32.mrf.mxu0
      %v2151 = vadd.f32 %v2107, %v2150
      %v2152 = vpop.f32.mrf.mxu0
      %v2153 = vadd.f32 %v2109, %v2152
      %2154 = vdwg.mxu0
      %2155 = vmatpush.bf16.msra.mxu0 %v1587
      %2156 = vmatpush.bf16.msra.mxu0 %v1585
      %2157 = vmatpush.bf16.msra.mxu0 %v1583
      %2158 = vmatpush.bf16.msra.mxu0 %v1581
      %2159 = vmatpush.bf16.msra.mxu0 %v1579
      %2160 = vmatpush.bf16.msra.mxu0 %v1577
      %2161 = vmatpush.bf16.msra.mxu0 %v1575
      %2162 = vmatpush.bf16.msra.mxu0 %v1573
      %2163 = vmatmul.bf16.gmra.mxu0 %v704
      %v2164 = vpop.f32.mrf.mxu0
      %v2165 = vadd.f32 %v2121, %v2164
      %v2166 = vpop.f32.mrf.mxu0
      %v2167 = vadd.f32 %v2123, %v2166
      %2168 = vmatmul.bf16.gmra.mxu0 %v715
      %v2169 = vpop.f32.mrf.mxu0
      %v2170 = vadd.f32 %v2126, %v2169
      %v2171 = vpop.f32.mrf.mxu0
      %v2172 = vadd.f32 %v2128, %v2171
      %2173 = vmatmul.bf16.gmra.mxu0 %v726
      %v2174 = vpop.f32.mrf.mxu0
      %v2175 = vadd.f32 %v2131, %v2174
      %v2176 = vpop.f32.mrf.mxu0
      %v2177 = vadd.f32 %v2133, %v2176
      %2178 = vmatmul.bf16.gmra.mxu0 %v737
      %v2179 = vpop.f32.mrf.mxu0
      %v2180 = vadd.f32 %v2136, %v2179
      %v2181 = vpop.f32.mrf.mxu0
      %v2182 = vadd.f32 %v2138, %v2181
      %2183 = vmatmul.bf16.gmra.mxu0 %v748
      %v2184 = vpop.f32.mrf.mxu0
      %v2185 = vadd.f32 %v2141, %v2184
      %v2186 = vpop.f32.mrf.mxu0
      %v2187 = vadd.f32 %v2143, %v2186
      %2188 = vmatmul.bf16.gmra.mxu0 %v759
      %v2189 = vpop.f32.mrf.mxu0
      %v2190 = vadd.f32 %v2146, %v2189
      %v2191 = vpop.f32.mrf.mxu0
      %v2192 = vadd.f32 %v2148, %v2191
      %2193 = vmatmul.bf16.gmra.mxu0 %v770
      %v2194 = vpop.f32.mrf.mxu0
      %v2195 = vadd.f32 %v2151, %v2194
      %v2196 = vpop.f32.mrf.mxu0
      %v2197 = vadd.f32 %v2153, %v2196
      %2198 = vdwg.mxu0
      %2199 = vmatpush.bf16.msra.mxu0 %v1603
      %2200 = vmatpush.bf16.msra.mxu0 %v1601
      %2201 = vmatpush.bf16.msra.mxu0 %v1599
      %2202 = vmatpush.bf16.msra.mxu0 %v1597
      %2203 = vmatpush.bf16.msra.mxu0 %v1595
      %2204 = vmatpush.bf16.msra.mxu0 %v1593
      %2205 = vmatpush.bf16.msra.mxu0 %v1591
      %2206 = vmatpush.bf16.msra.mxu0 %v1589
      %2207 = vmatmul.bf16.gmra.mxu0 %v705
      %v2208 = vpop.f32.mrf.mxu0
      %v2209 = vadd.f32 %v2165, %v2208
      %v2210 = vpop.f32.mrf.mxu0
      %v2211 = vadd.f32 %v2167, %v2210
      %2212 = vmatmul.bf16.gmra.mxu0 %v716
      %v2213 = vpop.f32.mrf.mxu0
      %v2214 = vadd.f32 %v2170, %v2213
      %v2215 = vpop.f32.mrf.mxu0
      %v2216 = vadd.f32 %v2172, %v2215
      %2217 = vmatmul.bf16.gmra.mxu0 %v727
      %v2218 = vpop.f32.mrf.mxu0
      %v2219 = vadd.f32 %v2175, %v2218
      %v2220 = vpop.f32.mrf.mxu0
      %v2221 = vadd.f32 %v2177, %v2220
      %2222 = vmatmul.bf16.gmra.mxu0 %v738
      %v2223 = vpop.f32.mrf.mxu0
      %v2224 = vadd.f32 %v2180, %v2223
      %v2225 = vpop.f32.mrf.mxu0
      %v2226 = vadd.f32 %v2182, %v2225
      %2227 = vmatmul.bf16.gmra.mxu0 %v749
      %v2228 = vpop.f32.mrf.mxu0
      %v2229 = vadd.f32 %v2185, %v2228
      %v2230 = vpop.f32.mrf.mxu0
      %v2231 = vadd.f32 %v2187, %v2230
      %2232 = vmatmul.bf16.gmra.mxu0 %v760
      %v2233 = vpop.f32.mrf.mxu0
      %v2234 = vadd.f32 %v2190, %v2233
      %v2235 = vpop.f32.mrf.mxu0
      %v2236 = vadd.f32 %v2192, %v2235
      %2237 = vmatmul.bf16.gmra.mxu0 %v771
      %v2238 = vpop.f32.mrf.mxu0
      %v2239 = vadd.f32 %v2195, %v2238
      %v2240 = vpop.f32.mrf.mxu0
      %v2241 = vadd.f32 %v2197, %v2240
      %2242 = vdwg.mxu0
      %2243 = vmatpush.bf16.msra.mxu0 0
      %2244 = vmatpush.bf16.msra.mxu0 0
      %2245 = vmatpush.bf16.msra.mxu0 0
      %2246 = vmatpush.bf16.msra.mxu0 0
      %2247 = vmatpush.bf16.msra.mxu0 %v1611
      %2248 = vmatpush.bf16.msra.mxu0 %v1609
      %2249 = vmatpush.bf16.msra.mxu0 %v1607
      %2250 = vmatpush.bf16.msra.mxu0 %v1605
      %2251 = vmatmul.bf16.gmra.mxu0 %v1783
      %v2252 = vpop.f32.mrf.mxu0
      %v2253 = vadd.f32 %v2209, %v2252
      %v2254 = vpop.f32.mrf.mxu0
      %v2255 = vadd.f32 %v2211, %v2254
      %2256 = vmatmul.bf16.gmra.mxu0 %v1786
      %v2257 = vpop.f32.mrf.mxu0
      %v2258 = vadd.f32 %v2214, %v2257
      %v2259 = vpop.f32.mrf.mxu0
      %v2260 = vadd.f32 %v2216, %v2259
      %2261 = vmatmul.bf16.gmra.mxu0 %v1789
      %v2262 = vpop.f32.mrf.mxu0
      %v2263 = vadd.f32 %v2219, %v2262
      %v2264 = vpop.f32.mrf.mxu0
      %v2265 = vadd.f32 %v2221, %v2264
      %2266 = vmatmul.bf16.gmra.mxu0 %v1792
      %v2267 = vpop.f32.mrf.mxu0
      %v2268 = vadd.f32 %v2224, %v2267
      %v2269 = vpop.f32.mrf.mxu0
      %v2270 = vadd.f32 %v2226, %v2269
      %2271 = vmatmul.bf16.gmra.mxu0 %v1795
      %v2272 = vpop.f32.mrf.mxu0
      %v2273 = vadd.f32 %v2229, %v2272
      %v2274 = vpop.f32.mrf.mxu0
      %v2275 = vadd.f32 %v2231, %v2274
      %2276 = vmatmul.bf16.gmra.mxu0 %v1798
      %v2277 = vpop.f32.mrf.mxu0
      %v2278 = vadd.f32 %v2234, %v2277
      %v2279 = vpop.f32.mrf.mxu0
      %v2280 = vadd.f32 %v2236, %v2279
      %2281 = vmatmul.bf16.gmra.mxu0 %v1801
      %v2282 = vpop.f32.mrf.mxu0
      %v2283 = vadd.f32 %v2239, %v2282
      %v2284 = vpop.f32.mrf.mxu0
      %v2285 = vadd.f32 %v2241, %v2284
      %2286 = vdwg.mxu0
      %2287 = vmatpush.bf16.msra.mxu0 %v1460
      %2288 = vmatpush.bf16.msra.mxu0 %v1458
      %2289 = vmatpush.bf16.msra.mxu0 %v1456
      %2290 = vmatpush.bf16.msra.mxu0 %v1454
      %2291 = vmatpush.bf16.msra.mxu0 %v1452
      %2292 = vmatpush.bf16.msra.mxu0 %v1450
      %2293 = vmatpush.bf16.msra.mxu0 %v1448
      %2294 = vmatpush.bf16.msra.mxu0 %v1446
      %2295 = vmatmul.bf16.gmra.mxu0 %v696
      %v2296 = vpop.f32.mrf.mxu0
      %v2297 = vadd.f32 0.0, %v2296
      %v2298 = vpop.f32.mrf.mxu0
      %v2299 = vadd.f32 0.0, %v2298
      %2300 = vmatmul.bf16.gmra.mxu0 %v707
      %v2301 = vpop.f32.mrf.mxu0
      %v2302 = vadd.f32 0.0, %v2301
      %v2303 = vpop.f32.mrf.mxu0
      %v2304 = vadd.f32 0.0, %v2303
      %2305 = vmatmul.bf16.gmra.mxu0 %v718
      %v2306 = vpop.f32.mrf.mxu0
      %v2307 = vadd.f32 0.0, %v2306
      %v2308 = vpop.f32.mrf.mxu0
      %v2309 = vadd.f32 0.0, %v2308
      %2310 = vmatmul.bf16.gmra.mxu0 %v729
      %v2311 = vpop.f32.mrf.mxu0
      %v2312 = vadd.f32 0.0, %v2311
      %v2313 = vpop.f32.mrf.mxu0
      %v2314 = vadd.f32 0.0, %v2313
      %2315 = vmatmul.bf16.gmra.mxu0 %v740
      %v2316 = vpop.f32.mrf.mxu0
      %v2317 = vadd.f32 0.0, %v2316
      %v2318 = vpop.f32.mrf.mxu0
      %v2319 = vadd.f32 0.0, %v2318
      %2320 = vmatmul.bf16.gmra.mxu0 %v751
      %v2321 = vpop.f32.mrf.mxu0
      %v2322 = vadd.f32 0.0, %v2321
      %v2323 = vpop.f32.mrf.mxu0
      %v2324 = vadd.f32 0.0, %v2323
      %2325 = vmatmul.bf16.gmra.mxu0 %v762
      %v2326 = vpop.f32.mrf.mxu0
      %v2327 = vadd.f32 0.0, %v2326
      %v2328 = vpop.f32.mrf.mxu0
      %v2329 = vadd.f32 0.0, %v2328
      %2330 = vdwg.mxu0
      %2331 = vmatpush.bf16.msra.mxu0 %v1476
      %2332 = vmatpush.bf16.msra.mxu0 %v1474
      %2333 = vmatpush.bf16.msra.mxu0 %v1472
      %2334 = vmatpush.bf16.msra.mxu0 %v1470
      %2335 = vmatpush.bf16.msra.mxu0 %v1468
      %2336 = vmatpush.bf16.msra.mxu0 %v1466
      %2337 = vmatpush.bf16.msra.mxu0 %v1464
      %2338 = vmatpush.bf16.msra.mxu0 %v1462
      %2339 = vmatmul.bf16.gmra.mxu0 %v697
      %v2340 = vpop.f32.mrf.mxu0
      %v2341 = vadd.f32 %v2297, %v2340
      %v2342 = vpop.f32.mrf.mxu0
      %v2343 = vadd.f32 %v2299, %v2342
      %2344 = vmatmul.bf16.gmra.mxu0 %v708
      %v2345 = vpop.f32.mrf.mxu0
      %v2346 = vadd.f32 %v2302, %v2345
      %v2347 = vpop.f32.mrf.mxu0
      %v2348 = vadd.f32 %v2304, %v2347
      %2349 = vmatmul.bf16.gmra.mxu0 %v719
      %v2350 = vpop.f32.mrf.mxu0
      %v2351 = vadd.f32 %v2307, %v2350
      %v2352 = vpop.f32.mrf.mxu0
      %v2353 = vadd.f32 %v2309, %v2352
      %2354 = vmatmul.bf16.gmra.mxu0 %v730
      %v2355 = vpop.f32.mrf.mxu0
      %v2356 = vadd.f32 %v2312, %v2355
      %v2357 = vpop.f32.mrf.mxu0
      %v2358 = vadd.f32 %v2314, %v2357
      %2359 = vmatmul.bf16.gmra.mxu0 %v741
      %v2360 = vpop.f32.mrf.mxu0
      %v2361 = vadd.f32 %v2317, %v2360
      %v2362 = vpop.f32.mrf.mxu0
      %v2363 = vadd.f32 %v2319, %v2362
      %2364 = vmatmul.bf16.gmra.mxu0 %v752
      %v2365 = vpop.f32.mrf.mxu0
      %v2366 = vadd.f32 %v2322, %v2365
      %v2367 = vpop.f32.mrf.mxu0
      %v2368 = vadd.f32 %v2324, %v2367
      %2369 = vmatmul.bf16.gmra.mxu0 %v763
      %v2370 = vpop.f32.mrf.mxu0
      %v2371 = vadd.f32 %v2327, %v2370
      %v2372 = vpop.f32.mrf.mxu0
      %v2373 = vadd.f32 %v2329, %v2372
      %2374 = vdwg.mxu0
      %2375 = vmatpush.bf16.msra.mxu0 %v1492
      %2376 = vmatpush.bf16.msra.mxu0 %v1490
      %2377 = vmatpush.bf16.msra.mxu0 %v1488
      %2378 = vmatpush.bf16.msra.mxu0 %v1486
      %2379 = vmatpush.bf16.msra.mxu0 %v1484
      %2380 = vmatpush.bf16.msra.mxu0 %v1482
      %2381 = vmatpush.bf16.msra.mxu0 %v1480
      %2382 = vmatpush.bf16.msra.mxu0 %v1478
      %2383 = vmatmul.bf16.gmra.mxu0 %v698
      %v2384 = vpop.f32.mrf.mxu0
      %v2385 = vadd.f32 %v2341, %v2384
      %v2386 = vpop.f32.mrf.mxu0
      %v2387 = vadd.f32 %v2343, %v2386
      %2388 = vmatmul.bf16.gmra.mxu0 %v709
      %v2389 = vpop.f32.mrf.mxu0
      %v2390 = vadd.f32 %v2346, %v2389
      %v2391 = vpop.f32.mrf.mxu0
      %v2392 = vadd.f32 %v2348, %v2391
      %2393 = vmatmul.bf16.gmra.mxu0 %v720
      %v2394 = vpop.f32.mrf.mxu0
      %v2395 = vadd.f32 %v2351, %v2394
      %v2396 = vpop.f32.mrf.mxu0
      %v2397 = vadd.f32 %v2353, %v2396
      %2398 = vmatmul.bf16.gmra.mxu0 %v731
      %v2399 = vpop.f32.mrf.mxu0
      %v2400 = vadd.f32 %v2356, %v2399
      %v2401 = vpop.f32.mrf.mxu0
      %v2402 = vadd.f32 %v2358, %v2401
      %2403 = vmatmul.bf16.gmra.mxu0 %v742
      %v2404 = vpop.f32.mrf.mxu0
      %v2405 = vadd.f32 %v2361, %v2404
      %v2406 = vpop.f32.mrf.mxu0
      %v2407 = vadd.f32 %v2363, %v2406
      %2408 = vmatmul.bf16.gmra.mxu0 %v753
      %v2409 = vpop.f32.mrf.mxu0
      %v2410 = vadd.f32 %v2366, %v2409
      %v2411 = vpop.f32.mrf.mxu0
      %v2412 = vadd.f32 %v2368, %v2411
      %2413 = vmatmul.bf16.gmra.mxu0 %v764
      %v2414 = vpop.f32.mrf.mxu0
      %v2415 = vadd.f32 %v2371, %v2414
      %v2416 = vpop.f32.mrf.mxu0
      %v2417 = vadd.f32 %v2373, %v2416
      %2418 = vdwg.mxu0
      %2419 = vmatpush.bf16.msra.mxu0 %v1508
      %2420 = vmatpush.bf16.msra.mxu0 %v1506
      %2421 = vmatpush.bf16.msra.mxu0 %v1504
      %2422 = vmatpush.bf16.msra.mxu0 %v1502
      %2423 = vmatpush.bf16.msra.mxu0 %v1500
      %2424 = vmatpush.bf16.msra.mxu0 %v1498
      %2425 = vmatpush.bf16.msra.mxu0 %v1496
      %2426 = vmatpush.bf16.msra.mxu0 %v1494
      %2427 = vmatmul.bf16.gmra.mxu0 %v699
      %v2428 = vpop.f32.mrf.mxu0
      %v2429 = vadd.f32 %v2385, %v2428
      %v2430 = vpop.f32.mrf.mxu0
      %v2431 = vadd.f32 %v2387, %v2430
      %2432 = vmatmul.bf16.gmra.mxu0 %v710
      %v2433 = vpop.f32.mrf.mxu0
      %v2434 = vadd.f32 %v2390, %v2433
      %v2435 = vpop.f32.mrf.mxu0
      %v2436 = vadd.f32 %v2392, %v2435
      %2437 = vmatmul.bf16.gmra.mxu0 %v721
      %v2438 = vpop.f32.mrf.mxu0
      %v2439 = vadd.f32 %v2395, %v2438
      %v2440 = vpop.f32.mrf.mxu0
      %v2441 = vadd.f32 %v2397, %v2440
      %2442 = vmatmul.bf16.gmra.mxu0 %v732
      %v2443 = vpop.f32.mrf.mxu0
      %v2444 = vadd.f32 %v2400, %v2443
      %v2445 = vpop.f32.mrf.mxu0
      %v2446 = vadd.f32 %v2402, %v2445
      %2447 = vmatmul.bf16.gmra.mxu0 %v743
      %v2448 = vpop.f32.mrf.mxu0
      %v2449 = vadd.f32 %v2405, %v2448
      %v2450 = vpop.f32.mrf.mxu0
      %v2451 = vadd.f32 %v2407, %v2450
      %2452 = vmatmul.bf16.gmra.mxu0 %v754
      %v2453 = vpop.f32.mrf.mxu0
      %v2454 = vadd.f32 %v2410, %v2453
      %v2455 = vpop.f32.mrf.mxu0
      %v2456 = vadd.f32 %v2412, %v2455
      %2457 = vmatmul.bf16.gmra.mxu0 %v765
      %v2458 = vpop.f32.mrf.mxu0
      %v2459 = vadd.f32 %v2415, %v2458
      %v2460 = vpop.f32.mrf.mxu0
      %v2461 = vadd.f32 %v2417, %v2460
      %2462 = vdwg.mxu0
      %2463 = vmatpush.bf16.msra.mxu0 %v1524
      %2464 = vmatpush.bf16.msra.mxu0 %v1522
      %2465 = vmatpush.bf16.msra.mxu0 %v1520
      %2466 = vmatpush.bf16.msra.mxu0 %v1518
      %2467 = vmatpush.bf16.msra.mxu0 %v1516
      %2468 = vmatpush.bf16.msra.mxu0 %v1514
      %2469 = vmatpush.bf16.msra.mxu0 %v1512
      %2470 = vmatpush.bf16.msra.mxu0 %v1510
      %2471 = vmatmul.bf16.gmra.mxu0 %v700
      %v2472 = vpop.f32.mrf.mxu0
      %v2473 = vadd.f32 %v2429, %v2472
      %v2474 = vpop.f32.mrf.mxu0
      %v2475 = vadd.f32 %v2431, %v2474
      %2476 = vmatmul.bf16.gmra.mxu0 %v711
      %v2477 = vpop.f32.mrf.mxu0
      %v2478 = vadd.f32 %v2434, %v2477
      %v2479 = vpop.f32.mrf.mxu0
      %v2480 = vadd.f32 %v2436, %v2479
      %2481 = vmatmul.bf16.gmra.mxu0 %v722
      %v2482 = vpop.f32.mrf.mxu0
      %v2483 = vadd.f32 %v2439, %v2482
      %v2484 = vpop.f32.mrf.mxu0
      %v2485 = vadd.f32 %v2441, %v2484
      %2486 = vmatmul.bf16.gmra.mxu0 %v733
      %v2487 = vpop.f32.mrf.mxu0
      %v2488 = vadd.f32 %v2444, %v2487
      %v2489 = vpop.f32.mrf.mxu0
      %v2490 = vadd.f32 %v2446, %v2489
      %2491 = vmatmul.bf16.gmra.mxu0 %v744
      %v2492 = vpop.f32.mrf.mxu0
      %v2493 = vadd.f32 %v2449, %v2492
      %v2494 = vpop.f32.mrf.mxu0
      %v2495 = vadd.f32 %v2451, %v2494
      %2496 = vmatmul.bf16.gmra.mxu0 %v755
      %v2497 = vpop.f32.mrf.mxu0
      %v2498 = vadd.f32 %v2454, %v2497
      %v2499 = vpop.f32.mrf.mxu0
      %v2500 = vadd.f32 %v2456, %v2499
      %2501 = vmatmul.bf16.gmra.mxu0 %v766
      %v2502 = vpop.f32.mrf.mxu0
      %v2503 = vadd.f32 %v2459, %v2502
      %v2504 = vpop.f32.mrf.mxu0
      %v2505 = vadd.f32 %v2461, %v2504
      %2506 = vdwg.mxu0
      %2507 = vmatpush.bf16.msra.mxu0 %v1540
      %2508 = vmatpush.bf16.msra.mxu0 %v1538
      %2509 = vmatpush.bf16.msra.mxu0 %v1536
      %2510 = vmatpush.bf16.msra.mxu0 %v1534
      %2511 = vmatpush.bf16.msra.mxu0 %v1532
      %2512 = vmatpush.bf16.msra.mxu0 %v1530
      %2513 = vmatpush.bf16.msra.mxu0 %v1528
      %2514 = vmatpush.bf16.msra.mxu0 %v1526
      %2515 = vmatmul.bf16.gmra.mxu0 %v701
      %v2516 = vpop.f32.mrf.mxu0
      %v2517 = vadd.f32 %v2473, %v2516
      %v2518 = vpop.f32.mrf.mxu0
      %v2519 = vadd.f32 %v2475, %v2518
      %2520 = vmatmul.bf16.gmra.mxu0 %v712
      %v2521 = vpop.f32.mrf.mxu0
      %v2522 = vadd.f32 %v2478, %v2521
      %v2523 = vpop.f32.mrf.mxu0
      %v2524 = vadd.f32 %v2480, %v2523
      %2525 = vmatmul.bf16.gmra.mxu0 %v723
      %v2526 = vpop.f32.mrf.mxu0
      %v2527 = vadd.f32 %v2483, %v2526
      %v2528 = vpop.f32.mrf.mxu0
      %v2529 = vadd.f32 %v2485, %v2528
      %2530 = vmatmul.bf16.gmra.mxu0 %v734
      %v2531 = vpop.f32.mrf.mxu0
      %v2532 = vadd.f32 %v2488, %v2531
      %v2533 = vpop.f32.mrf.mxu0
      %v2534 = vadd.f32 %v2490, %v2533
      %2535 = vmatmul.bf16.gmra.mxu0 %v745
      %v2536 = vpop.f32.mrf.mxu0
      %v2537 = vadd.f32 %v2493, %v2536
      %v2538 = vpop.f32.mrf.mxu0
      %v2539 = vadd.f32 %v2495, %v2538
      %2540 = vmatmul.bf16.gmra.mxu0 %v756
      %v2541 = vpop.f32.mrf.mxu0
      %v2542 = vadd.f32 %v2498, %v2541
      %v2543 = vpop.f32.mrf.mxu0
      %v2544 = vadd.f32 %v2500, %v2543
      %2545 = vmatmul.bf16.gmra.mxu0 %v767
      %v2546 = vpop.f32.mrf.mxu0
      %v2547 = vadd.f32 %v2503, %v2546
      %v2548 = vpop.f32.mrf.mxu0
      %v2549 = vadd.f32 %v2505, %v2548
      %2550 = vdwg.mxu0
      %2551 = vmatpush.bf16.msra.mxu0 %v1556
      %2552 = vmatpush.bf16.msra.mxu0 %v1554
      %2553 = vmatpush.bf16.msra.mxu0 %v1552
      %2554 = vmatpush.bf16.msra.mxu0 %v1550
      %2555 = vmatpush.bf16.msra.mxu0 %v1548
      %2556 = vmatpush.bf16.msra.mxu0 %v1546
      %2557 = vmatpush.bf16.msra.mxu0 %v1544
      %2558 = vmatpush.bf16.msra.mxu0 %v1542
      %2559 = vmatmul.bf16.gmra.mxu0 %v702
      %v2560 = vpop.f32.mrf.mxu0
      %v2561 = vadd.f32 %v2517, %v2560
      %v2562 = vpop.f32.mrf.mxu0
      %v2563 = vadd.f32 %v2519, %v2562
      %2564 = vmatmul.bf16.gmra.mxu0 %v713
      %v2565 = vpop.f32.mrf.mxu0
      %v2566 = vadd.f32 %v2522, %v2565
      %v2567 = vpop.f32.mrf.mxu0
      %v2568 = vadd.f32 %v2524, %v2567
      %2569 = vmatmul.bf16.gmra.mxu0 %v724
      %v2570 = vpop.f32.mrf.mxu0
      %v2571 = vadd.f32 %v2527, %v2570
      %v2572 = vpop.f32.mrf.mxu0
      %v2573 = vadd.f32 %v2529, %v2572
      %2574 = vmatmul.bf16.gmra.mxu0 %v735
      %v2575 = vpop.f32.mrf.mxu0
      %v2576 = vadd.f32 %v2532, %v2575
      %v2577 = vpop.f32.mrf.mxu0
      %v2578 = vadd.f32 %v2534, %v2577
      %2579 = vmatmul.bf16.gmra.mxu0 %v746
      %v2580 = vpop.f32.mrf.mxu0
      %v2581 = vadd.f32 %v2537, %v2580
      %v2582 = vpop.f32.mrf.mxu0
      %v2583 = vadd.f32 %v2539, %v2582
      %2584 = vmatmul.bf16.gmra.mxu0 %v757
      %v2585 = vpop.f32.mrf.mxu0
      %v2586 = vadd.f32 %v2542, %v2585
      %v2587 = vpop.f32.mrf.mxu0
      %v2588 = vadd.f32 %v2544, %v2587
      %2589 = vmatmul.bf16.gmra.mxu0 %v768
      %v2590 = vpop.f32.mrf.mxu0
      %v2591 = vadd.f32 %v2547, %v2590
      %v2592 = vpop.f32.mrf.mxu0
      %v2593 = vadd.f32 %v2549, %v2592
      %2594 = vdwg.mxu0
      %2595 = vmatpush.bf16.msra.mxu0 %v1572
      %2596 = vmatpush.bf16.msra.mxu0 %v1570
      %2597 = vmatpush.bf16.msra.mxu0 %v1568
      %2598 = vmatpush.bf16.msra.mxu0 %v1566
      %2599 = vmatpush.bf16.msra.mxu0 %v1564
      %2600 = vmatpush.bf16.msra.mxu0 %v1562
      %2601 = vmatpush.bf16.msra.mxu0 %v1560
      %2602 = vmatpush.bf16.msra.mxu0 %v1558
      %2603 = vmatmul.bf16.gmra.mxu0 %v703
      %v2604 = vpop.f32.mrf.mxu0
      %v2605 = vadd.f32 %v2561, %v2604
      %v2606 = vpop.f32.mrf.mxu0
      %v2607 = vadd.f32 %v2563, %v2606
      %2608 = vmatmul.bf16.gmra.mxu0 %v714
      %v2609 = vpop.f32.mrf.mxu0
      %v2610 = vadd.f32 %v2566, %v2609
      %v2611 = vpop.f32.mrf.mxu0
      %v2612 = vadd.f32 %v2568, %v2611
      %2613 = vmatmul.bf16.gmra.mxu0 %v725
      %v2614 = vpop.f32.mrf.mxu0
      %v2615 = vadd.f32 %v2571, %v2614
      %v2616 = vpop.f32.mrf.mxu0
      %v2617 = vadd.f32 %v2573, %v2616
      %2618 = vmatmul.bf16.gmra.mxu0 %v736
      %v2619 = vpop.f32.mrf.mxu0
      %v2620 = vadd.f32 %v2576, %v2619
      %v2621 = vpop.f32.mrf.mxu0
      %v2622 = vadd.f32 %v2578, %v2621
      %2623 = vmatmul.bf16.gmra.mxu0 %v747
      %v2624 = vpop.f32.mrf.mxu0
      %v2625 = vadd.f32 %v2581, %v2624
      %v2626 = vpop.f32.mrf.mxu0
      %v2627 = vadd.f32 %v2583, %v2626
      %2628 = vmatmul.bf16.gmra.mxu0 %v758
      %v2629 = vpop.f32.mrf.mxu0
      %v2630 = vadd.f32 %v2586, %v2629
      %v2631 = vpop.f32.mrf.mxu0
      %v2632 = vadd.f32 %v2588, %v2631
      %2633 = vmatmul.bf16.gmra.mxu0 %v769
      %v2634 = vpop.f32.mrf.mxu0
      %v2635 = vadd.f32 %v2591, %v2634
      %v2636 = vpop.f32.mrf.mxu0
      %v2637 = vadd.f32 %v2593, %v2636
      %2638 = vdwg.mxu0
      %2639 = vmatpush.bf16.msra.mxu0 %v1588
      %2640 = vmatpush.bf16.msra.mxu0 %v1586
      %2641 = vmatpush.bf16.msra.mxu0 %v1584
      %2642 = vmatpush.bf16.msra.mxu0 %v1582
      %2643 = vmatpush.bf16.msra.mxu0 %v1580
      %2644 = vmatpush.bf16.msra.mxu0 %v1578
      %2645 = vmatpush.bf16.msra.mxu0 %v1576
      %2646 = vmatpush.bf16.msra.mxu0 %v1574
      %2647 = vmatmul.bf16.gmra.mxu0 %v704
      %v2648 = vpop.f32.mrf.mxu0
      %v2649 = vadd.f32 %v2605, %v2648
      %v2650 = vpop.f32.mrf.mxu0
      %v2651 = vadd.f32 %v2607, %v2650
      %2652 = vmatmul.bf16.gmra.mxu0 %v715
      %v2653 = vpop.f32.mrf.mxu0
      %v2654 = vadd.f32 %v2610, %v2653
      %v2655 = vpop.f32.mrf.mxu0
      %v2656 = vadd.f32 %v2612, %v2655
      %2657 = vmatmul.bf16.gmra.mxu0 %v726
      %v2658 = vpop.f32.mrf.mxu0
      %v2659 = vadd.f32 %v2615, %v2658
      %v2660 = vpop.f32.mrf.mxu0
      %v2661 = vadd.f32 %v2617, %v2660
      %2662 = vmatmul.bf16.gmra.mxu0 %v737
      %v2663 = vpop.f32.mrf.mxu0
      %v2664 = vadd.f32 %v2620, %v2663
      %v2665 = vpop.f32.mrf.mxu0
      %v2666 = vadd.f32 %v2622, %v2665
      %2667 = vmatmul.bf16.gmra.mxu0 %v748
      %v2668 = vpop.f32.mrf.mxu0
      %v2669 = vadd.f32 %v2625, %v2668
      %v2670 = vpop.f32.mrf.mxu0
      %v2671 = vadd.f32 %v2627, %v2670
      %2672 = vmatmul.bf16.gmra.mxu0 %v759
      %v2673 = vpop.f32.mrf.mxu0
      %v2674 = vadd.f32 %v2630, %v2673
      %v2675 = vpop.f32.mrf.mxu0
      %v2676 = vadd.f32 %v2632, %v2675
      %2677 = vmatmul.bf16.gmra.mxu0 %v770
      %v2678 = vpop.f32.mrf.mxu0
      %v2679 = vadd.f32 %v2635, %v2678
      %v2680 = vpop.f32.mrf.mxu0
      %v2681 = vadd.f32 %v2637, %v2680
      %2682 = vdwg.mxu0
      %2683 = vmatpush.bf16.msra.mxu0 %v1604
      %2684 = vmatpush.bf16.msra.mxu0 %v1602
      %2685 = vmatpush.bf16.msra.mxu0 %v1600
      %2686 = vmatpush.bf16.msra.mxu0 %v1598
      %2687 = vmatpush.bf16.msra.mxu0 %v1596
      %2688 = vmatpush.bf16.msra.mxu0 %v1594
      %2689 = vmatpush.bf16.msra.mxu0 %v1592
      %2690 = vmatpush.bf16.msra.mxu0 %v1590
      %2691 = vmatmul.bf16.gmra.mxu0 %v705
      %v2692 = vpop.f32.mrf.mxu0
      %v2693 = vadd.f32 %v2649, %v2692
      %v2694 = vpop.f32.mrf.mxu0
      %v2695 = vadd.f32 %v2651, %v2694
      %2696 = vmatmul.bf16.gmra.mxu0 %v716
      %v2697 = vpop.f32.mrf.mxu0
      %v2698 = vadd.f32 %v2654, %v2697
      %v2699 = vpop.f32.mrf.mxu0
      %v2700 = vadd.f32 %v2656, %v2699
      %2701 = vmatmul.bf16.gmra.mxu0 %v727
      %v2702 = vpop.f32.mrf.mxu0
      %v2703 = vadd.f32 %v2659, %v2702
      %v2704 = vpop.f32.mrf.mxu0
      %v2705 = vadd.f32 %v2661, %v2704
      %2706 = vmatmul.bf16.gmra.mxu0 %v738
      %v2707 = vpop.f32.mrf.mxu0
      %v2708 = vadd.f32 %v2664, %v2707
      %v2709 = vpop.f32.mrf.mxu0
      %v2710 = vadd.f32 %v2666, %v2709
      %2711 = vmatmul.bf16.gmra.mxu0 %v749
      %v2712 = vpop.f32.mrf.mxu0
      %v2713 = vadd.f32 %v2669, %v2712
      %v2714 = vpop.f32.mrf.mxu0
      %v2715 = vadd.f32 %v2671, %v2714
      %2716 = vmatmul.bf16.gmra.mxu0 %v760
      %v2717 = vpop.f32.mrf.mxu0
      %v2718 = vadd.f32 %v2674, %v2717
      %v2719 = vpop.f32.mrf.mxu0
      %v2720 = vadd.f32 %v2676, %v2719
      %2721 = vmatmul.bf16.gmra.mxu0 %v771
      %v2722 = vpop.f32.mrf.mxu0
      %v2723 = vadd.f32 %v2679, %v2722
      %v2724 = vpop.f32.mrf.mxu0
      %v2725 = vadd.f32 %v2681, %v2724
      %2726 = vdwg.mxu0
      %2727 = vmatpush.bf16.msra.mxu0 0
      %2728 = vmatpush.bf16.msra.mxu0 0
      %2729 = vmatpush.bf16.msra.mxu0 0
      %2730 = vmatpush.bf16.msra.mxu0 0
      %2731 = vmatpush.bf16.msra.mxu0 %v1612
      %2732 = vmatpush.bf16.msra.mxu0 %v1610
      %2733 = vmatpush.bf16.msra.mxu0 %v1608
      %2734 = vmatpush.bf16.msra.mxu0 %v1606
      %2735 = vmatmul.bf16.gmra.mxu0 %v1783
      %v2736 = vpop.f32.mrf.mxu0
      %v2737 = vadd.f32 %v2693, %v2736
      %v2738 = vpop.f32.mrf.mxu0
      %v2739 = vadd.f32 %v2695, %v2738
      %2740 = vmatmul.bf16.gmra.mxu0 %v1786
      %v2741 = vpop.f32.mrf.mxu0
      %v2742 = vadd.f32 %v2698, %v2741
      %v2743 = vpop.f32.mrf.mxu0
      %v2744 = vadd.f32 %v2700, %v2743
      %2745 = vmatmul.bf16.gmra.mxu0 %v1789
      %v2746 = vpop.f32.mrf.mxu0
      %v2747 = vadd.f32 %v2703, %v2746
      %v2748 = vpop.f32.mrf.mxu0
      %v2749 = vadd.f32 %v2705, %v2748
      %2750 = vmatmul.bf16.gmra.mxu0 %v1792
      %v2751 = vpop.f32.mrf.mxu0
      %v2752 = vadd.f32 %v2708, %v2751
      %v2753 = vpop.f32.mrf.mxu0
      %v2754 = vadd.f32 %v2710, %v2753
      %2755 = vmatmul.bf16.gmra.mxu0 %v1795
      %v2756 = vpop.f32.mrf.mxu0
      %v2757 = vadd.f32 %v2713, %v2756
      %v2758 = vpop.f32.mrf.mxu0
      %v2759 = vadd.f32 %v2715, %v2758
      %2760 = vmatmul.bf16.gmra.mxu0 %v1798
      %v2761 = vpop.f32.mrf.mxu0
      %v2762 = vadd.f32 %v2718, %v2761
      %v2763 = vpop.f32.mrf.mxu0
      %v2764 = vadd.f32 %v2720, %v2763
      %2765 = vmatmul.bf16.gmra.mxu0 %v1801
      %v2766 = vpop.f32.mrf.mxu0
      %v2767 = vadd.f32 %v2723, %v2766
      %v2768 = vpop.f32.mrf.mxu0
      %v2769 = vadd.f32 %v2725, %v2768
      %2770 = vdwg.mxu0
      %vm2771 = vcmask 556032
      %v2772 = vsel %vm2771, %v2737, 0.0
      %v2773 = vadd.f32 %v2253, %v2772
      %2774 = vadd.xlane.f32.xlu0 %v2773
      %v2775 = vpop.xlane.xlu0 %2774
      %v2776 = vsel %vm2771, %v2739, 0.0
      %v2777 = vadd.f32 %v2255, %v2776
      %2778 = vadd.xlane.f32.xlu0 %v2777
      %v2779 = vpop.xlane.xlu0 %2778
      %v2780 = vsel %vm2771, %v2742, 0.0
      %v2781 = vadd.f32 %v2258, %v2780
      %2782 = vadd.xlane.f32.xlu0 %v2781
      %v2783 = vpop.xlane.xlu0 %2782
      %v2784 = vsel %vm2771, %v2744, 0.0
      %v2785 = vadd.f32 %v2260, %v2784
      %2786 = vadd.xlane.f32.xlu0 %v2785
      %v2787 = vpop.xlane.xlu0 %2786
      %v2788 = vsel %vm2771, %v2747, 0.0
      %v2789 = vadd.f32 %v2263, %v2788
      %2790 = vadd.xlane.f32.xlu0 %v2789
      %v2791 = vpop.xlane.xlu0 %2790
      %v2792 = vsel %vm2771, %v2749, 0.0
      %v2793 = vadd.f32 %v2265, %v2792
      %2794 = vadd.xlane.f32.xlu0 %v2793
      %v2795 = vpop.xlane.xlu0 %2794
      %v2796 = vsel %vm2771, %v2752, 0.0
      %v2797 = vadd.f32 %v2268, %v2796
      %2798 = vadd.xlane.f32.xlu0 %v2797
      %v2799 = vpop.xlane.xlu0 %2798
      %v2800 = vsel %vm2771, %v2754, 0.0
      %v2801 = vadd.f32 %v2270, %v2800
      %2802 = vadd.xlane.f32.xlu0 %v2801
      %v2803 = vpop.xlane.xlu0 %2802
      %v2804 = vsel %vm2771, %v2757, 0.0
      %v2805 = vadd.f32 %v2273, %v2804
      %2806 = vadd.xlane.f32.xlu0 %v2805
      %v2807 = vpop.xlane.xlu0 %2806
      %v2808 = vsel %vm2771, %v2759, 0.0
      %v2809 = vadd.f32 %v2275, %v2808
      %2810 = vadd.xlane.f32.xlu0 %v2809
      %v2811 = vpop.xlane.xlu0 %2810
      %v2812 = vsel %vm2771, %v2762, 0.0
      %v2813 = vadd.f32 %v2278, %v2812
      %2814 = vadd.xlane.f32.xlu0 %v2813
      %v2815 = vpop.xlane.xlu0 %2814
      %v2816 = vsel %vm2771, %v2764, 0.0
      %v2817 = vadd.f32 %v2280, %v2816
      %2818 = vadd.xlane.f32.xlu0 %v2817
      %v2819 = vpop.xlane.xlu0 %2818
      %v2820 = vsel %vm2771, %v2767, 0.0
      %v2821 = vadd.f32 %v2283, %v2820
      %2822 = vadd.xlane.f32.xlu0 %v2821
      %v2823 = vpop.xlane.xlu0 %2822
      %v2824 = vsel %vm2771, %v2769, 0.0
      %v2825 = vadd.f32 %v2285, %v2824
      %2826 = vadd.xlane.f32.xlu0 %v2825
      %v2827 = vpop.xlane.xlu0 %2826
      %v2828 = vmul.f32 %v2253, %v2253
      %v2829 = vmul.f32 %v2737, %v2737
      %v2830 = vmul.f32 %v2255, %v2255
      %v2831 = vmul.f32 %v2739, %v2739
      %v2832 = vmul.f32 %v2258, %v2258
      %v2833 = vmul.f32 %v2742, %v2742
      %v2834 = vmul.f32 %v2260, %v2260
      %v2835 = vmul.f32 %v2744, %v2744
      %v2836 = vmul.f32 %v2263, %v2263
      %v2837 = vmul.f32 %v2747, %v2747
      %v2838 = vmul.f32 %v2265, %v2265
      %v2839 = vmul.f32 %v2749, %v2749
      %v2840 = vmul.f32 %v2268, %v2268
      %v2841 = vmul.f32 %v2752, %v2752
      %v2842 = vmul.f32 %v2270, %v2270
      %v2843 = vmul.f32 %v2754, %v2754
      %v2844 = vmul.f32 %v2273, %v2273
      %v2845 = vmul.f32 %v2757, %v2757
      %v2846 = vmul.f32 %v2275, %v2275
      %v2847 = vmul.f32 %v2759, %v2759
      %v2848 = vmul.f32 %v2278, %v2278
      %v2849 = vmul.f32 %v2762, %v2762
      %v2850 = vmul.f32 %v2280, %v2280
      %v2851 = vmul.f32 %v2764, %v2764
      %v2852 = vmul.f32 %v2283, %v2283
      %v2853 = vmul.f32 %v2767, %v2767
      %v2854 = vmul.f32 %v2285, %v2285
      %v2855 = vmul.f32 %v2769, %v2769
      %v2856 = vsel %vm2771, %v2829, 0.0
      %v2857 = vadd.f32 %v2828, %v2856
      %2858 = vadd.xlane.f32.xlu0 %v2857
      %v2859 = vpop.xlane.xlu0 %2858
      %v2860 = vsel %vm2771, %v2831, 0.0
      %v2861 = vadd.f32 %v2830, %v2860
      %2862 = vadd.xlane.f32.xlu0 %v2861
      %v2863 = vpop.xlane.xlu0 %2862
      %v2864 = vsel %vm2771, %v2833, 0.0
      %v2865 = vadd.f32 %v2832, %v2864
      %2866 = vadd.xlane.f32.xlu0 %v2865
      %v2867 = vpop.xlane.xlu0 %2866
      %v2868 = vsel %vm2771, %v2835, 0.0
      %v2869 = vadd.f32 %v2834, %v2868
      %2870 = vadd.xlane.f32.xlu0 %v2869
      %v2871 = vpop.xlane.xlu0 %2870
      %v2872 = vsel %vm2771, %v2837, 0.0
      %v2873 = vadd.f32 %v2836, %v2872
      %2874 = vadd.xlane.f32.xlu0 %v2873
      %v2875 = vpop.xlane.xlu0 %2874
      %v2876 = vsel %vm2771, %v2839, 0.0
      %v2877 = vadd.f32 %v2838, %v2876
      %2878 = vadd.xlane.f32.xlu0 %v2877
      %v2879 = vpop.xlane.xlu0 %2878
      %v2880 = vsel %vm2771, %v2841, 0.0
      %v2881 = vadd.f32 %v2840, %v2880
      %2882 = vadd.xlane.f32.xlu0 %v2881
      %v2883 = vpop.xlane.xlu0 %2882
      %v2884 = vsel %vm2771, %v2843, 0.0
      %v2885 = vadd.f32 %v2842, %v2884
      %2886 = vadd.xlane.f32.xlu0 %v2885
      %v2887 = vpop.xlane.xlu0 %2886
      %v2888 = vsel %vm2771, %v2845, 0.0
      %v2889 = vadd.f32 %v2844, %v2888
      %2890 = vadd.xlane.f32.xlu0 %v2889
      %v2891 = vpop.xlane.xlu0 %2890
      %v2892 = vsel %vm2771, %v2847, 0.0
      %v2893 = vadd.f32 %v2846, %v2892
      %2894 = vadd.xlane.f32.xlu0 %v2893
      %v2895 = vpop.xlane.xlu0 %2894
      %v2896 = vsel %vm2771, %v2849, 0.0
      %v2897 = vadd.f32 %v2848, %v2896
      %2898 = vadd.xlane.f32.xlu0 %v2897
      %v2899 = vpop.xlane.xlu0 %2898
      %v2900 = vsel %vm2771, %v2851, 0.0
      %v2901 = vadd.f32 %v2850, %v2900
      %2902 = vadd.xlane.f32.xlu0 %v2901
      %v2903 = vpop.xlane.xlu0 %2902
      %v2904 = vsel %vm2771, %v2853, 0.0
      %v2905 = vadd.f32 %v2852, %v2904
      %2906 = vadd.xlane.f32.xlu0 %v2905
      %v2907 = vpop.xlane.xlu0 %2906
      %v2908 = vsel %vm2771, %v2855, 0.0
      %v2909 = vadd.f32 %v2854, %v2908
      %2910 = vadd.xlane.f32.xlu0 %v2909
      %v2911 = vpop.xlane.xlu0 %2910
      %v2912 = vmul.f32 %v2775, 0.0051020407
      %v2913 = vmul.f32 %v2779, 0.0051020407
      %v2914 = vmul.f32 %v2783, 0.0051020407
      %v2915 = vmul.f32 %v2787, 0.0051020407
      %v2916 = vmul.f32 %v2791, 0.0051020407
      %v2917 = vmul.f32 %v2795, 0.0051020407
      %v2918 = vmul.f32 %v2799, 0.0051020407
      %v2919 = vmul.f32 %v2803, 0.0051020407
      %v2920 = vmul.f32 %v2807, 0.0051020407
      %v2921 = vmul.f32 %v2811, 0.0051020407
      %v2922 = vmul.f32 %v2815, 0.0051020407
      %v2923 = vmul.f32 %v2819, 0.0051020407
      %v2924 = vmul.f32 %v2823, 0.0051020407
      %v2925 = vmul.f32 %v2827, 0.0051020407
      %v2926 = vmul.f32 %v2859, 0.0051020407
      %v2927 = vmul.f32 %v2863, 0.0051020407
      %v2928 = vmul.f32 %v2867, 0.0051020407
      %v2929 = vmul.f32 %v2871, 0.0051020407
      %v2930 = vmul.f32 %v2875, 0.0051020407
      %v2931 = vmul.f32 %v2879, 0.0051020407
      %v2932 = vmul.f32 %v2883, 0.0051020407
      %v2933 = vmul.f32 %v2887, 0.0051020407
      %v2934 = vmul.f32 %v2891, 0.0051020407
      %v2935 = vmul.f32 %v2895, 0.0051020407
      %v2936 = vmul.f32 %v2899, 0.0051020407
      %v2937 = vmul.f32 %v2903, 0.0051020407
      %v2938 = vmul.f32 %v2907, 0.0051020407
      %v2939 = vmul.f32 %v2911, 0.0051020407
      %v2940 = vmul.f32 %v2912, %v2912
      %v2941 = vmul.f32 %v2913, %v2913
      %v2942 = vmul.f32 %v2914, %v2914
      %v2943 = vmul.f32 %v2915, %v2915
      %v2944 = vmul.f32 %v2916, %v2916
      %v2945 = vmul.f32 %v2917, %v2917
      %v2946 = vmul.f32 %v2918, %v2918
      %v2947 = vmul.f32 %v2919, %v2919
      %v2948 = vmul.f32 %v2920, %v2920
      %v2949 = vmul.f32 %v2921, %v2921
      %v2950 = vmul.f32 %v2922, %v2922
      %v2951 = vmul.f32 %v2923, %v2923
      %v2952 = vmul.f32 %v2924, %v2924
      %v2953 = vmul.f32 %v2925, %v2925
      %v2954 = vsub.f32 %v2926, %v2940
      %v2955 = vsub.f32 %v2927, %v2941
      %v2956 = vsub.f32 %v2928, %v2942
      %v2957 = vsub.f32 %v2929, %v2943
      %v2958 = vsub.f32 %v2930, %v2944
      %v2959 = vsub.f32 %v2931, %v2945
      %v2960 = vsub.f32 %v2932, %v2946
      %v2961 = vsub.f32 %v2933, %v2947
      %v2962 = vsub.f32 %v2934, %v2948
      %v2963 = vsub.f32 %v2935, %v2949
      %v2964 = vsub.f32 %v2936, %v2950
      %v2965 = vsub.f32 %v2937, %v2951
      %v2966 = vsub.f32 %v2938, %v2952
      %v2967 = vsub.f32 %v2939, %v2953
      %v2968 = vmax.f32 %v2954, 0.0
      %v2969 = vmax.f32 %v2955, 0.0
      %v2970 = vmax.f32 %v2956, 0.0
      %v2971 = vmax.f32 %v2957, 0.0
      %v2972 = vmax.f32 %v2958, 0.0
      %v2973 = vmax.f32 %v2959, 0.0
      %v2974 = vmax.f32 %v2960, 0.0
      %v2975 = vmax.f32 %v2961, 0.0
      %v2976 = vmax.f32 %v2962, 0.0
      %v2977 = vmax.f32 %v2963, 0.0
      %v2978 = vmax.f32 %v2964, 0.0
      %v2979 = vmax.f32 %v2965, 0.0
      %v2980 = vmax.f32 %v2966, 0.0
      %v2981 = vmax.f32 %v2967, 0.0
      %v2982 = vadd.f32 %v2968, 0.001
      %v2983 = vadd.f32 %v2969, 0.001
      %v2984 = vadd.f32 %v2970, 0.001
      %v2985 = vadd.f32 %v2971, 0.001
      %v2986 = vadd.f32 %v2972, 0.001
      %v2987 = vadd.f32 %v2973, 0.001
      %v2988 = vadd.f32 %v2974, 0.001
      %v2989 = vadd.f32 %v2975, 0.001
      %v2990 = vadd.f32 %v2976, 0.001
      %v2991 = vadd.f32 %v2977, 0.001
      %v2992 = vadd.f32 %v2978, 0.001
      %v2993 = vadd.f32 %v2979, 0.001
      %v2994 = vadd.f32 %v2980, 0.001
      %v2995 = vadd.f32 %v2981, 0.001
      %v2996 = vrsqrt.pop %v2982
      %v2997 = vmul.f32 %v2996, %v2982
      %v2998 = vmul.f32 %v2997, %v2996
      %v2999 = vmul.f32 0.5, %v2998
      %v3000 = vsub.f32 1.5, %v2999
      %v3001 = vmul.f32 %v2996, %v3000
      %vm3002 = vweird.f32 %v2982
      %vm3003 = vweird.f32 %v2996
      %vm3004 = vmor %vm3002, %vm3003
      %v3005 = vsel %vm3004, %v2996, %v3001
      %v3006 = vrsqrt.pop %v2983
      %v3007 = vmul.f32 %v3006, %v2983
      %v3008 = vmul.f32 %v3007, %v3006
      %v3009 = vmul.f32 0.5, %v3008
      %v3010 = vsub.f32 1.5, %v3009
      %v3011 = vmul.f32 %v3006, %v3010
      %vm3012 = vweird.f32 %v2983
      %vm3013 = vweird.f32 %v3006
      %vm3014 = vmor %vm3012, %vm3013
      %v3015 = vsel %vm3014, %v3006, %v3011
      %v3016 = vrsqrt.pop %v2984
      %v3017 = vmul.f32 %v3016, %v2984
      %v3018 = vmul.f32 %v3017, %v3016
      %v3019 = vmul.f32 0.5, %v3018
      %v3020 = vsub.f32 1.5, %v3019
      %v3021 = vmul.f32 %v3016, %v3020
      %vm3022 = vweird.f32 %v2984
      %vm3023 = vweird.f32 %v3016
      %vm3024 = vmor %vm3022, %vm3023
      %v3025 = vsel %vm3024, %v3016, %v3021
      %v3026 = vrsqrt.pop %v2985
      %v3027 = vmul.f32 %v3026, %v2985
      %v3028 = vmul.f32 %v3027, %v3026
      %v3029 = vmul.f32 0.5, %v3028
      %v3030 = vsub.f32 1.5, %v3029
      %v3031 = vmul.f32 %v3026, %v3030
      %vm3032 = vweird.f32 %v2985
      %vm3033 = vweird.f32 %v3026
      %vm3034 = vmor %vm3032, %vm3033
      %v3035 = vsel %vm3034, %v3026, %v3031
      %v3036 = vrsqrt.pop %v2986
      %v3037 = vmul.f32 %v3036, %v2986
      %v3038 = vmul.f32 %v3037, %v3036
      %v3039 = vmul.f32 0.5, %v3038
      %v3040 = vsub.f32 1.5, %v3039
      %v3041 = vmul.f32 %v3036, %v3040
      %vm3042 = vweird.f32 %v2986
      %vm3043 = vweird.f32 %v3036
      %vm3044 = vmor %vm3042, %vm3043
      %v3045 = vsel %vm3044, %v3036, %v3041
      %v3046 = vrsqrt.pop %v2987
      %v3047 = vmul.f32 %v3046, %v2987
      %v3048 = vmul.f32 %v3047, %v3046
      %v3049 = vmul.f32 0.5, %v3048
      %v3050 = vsub.f32 1.5, %v3049
      %v3051 = vmul.f32 %v3046, %v3050
      %vm3052 = vweird.f32 %v2987
      %vm3053 = vweird.f32 %v3046
      %vm3054 = vmor %vm3052, %vm3053
      %v3055 = vsel %vm3054, %v3046, %v3051
      %v3056 = vrsqrt.pop %v2988
      %v3057 = vmul.f32 %v3056, %v2988
      %v3058 = vmul.f32 %v3057, %v3056
      %v3059 = vmul.f32 0.5, %v3058
      %v3060 = vsub.f32 1.5, %v3059
      %v3061 = vmul.f32 %v3056, %v3060
      %vm3062 = vweird.f32 %v2988
      %vm3063 = vweird.f32 %v3056
      %vm3064 = vmor %vm3062, %vm3063
      %v3065 = vsel %vm3064, %v3056, %v3061
      %v3066 = vrsqrt.pop %v2989
      %v3067 = vmul.f32 %v3066, %v2989
      %v3068 = vmul.f32 %v3067, %v3066
      %v3069 = vmul.f32 0.5, %v3068
      %v3070 = vsub.f32 1.5, %v3069
      %v3071 = vmul.f32 %v3066, %v3070
      %vm3072 = vweird.f32 %v2989
      %vm3073 = vweird.f32 %v3066
      %vm3074 = vmor %vm3072, %vm3073
      %v3075 = vsel %vm3074, %v3066, %v3071
      %v3076 = vrsqrt.pop %v2990
      %v3077 = vmul.f32 %v3076, %v2990
      %v3078 = vmul.f32 %v3077, %v3076
      %v3079 = vmul.f32 0.5, %v3078
      %v3080 = vsub.f32 1.5, %v3079
      %v3081 = vmul.f32 %v3076, %v3080
      %vm3082 = vweird.f32 %v2990
      %vm3083 = vweird.f32 %v3076
      %vm3084 = vmor %vm3082, %vm3083
      %v3085 = vsel %vm3084, %v3076, %v3081
      %v3086 = vrsqrt.pop %v2991
      %v3087 = vmul.f32 %v3086, %v2991
      %v3088 = vmul.f32 %v3087, %v3086
      %v3089 = vmul.f32 0.5, %v3088
      %v3090 = vsub.f32 1.5, %v3089
      %v3091 = vmul.f32 %v3086, %v3090
      %vm3092 = vweird.f32 %v2991
      %vm3093 = vweird.f32 %v3086
      %vm3094 = vmor %vm3092, %vm3093
      %v3095 = vsel %vm3094, %v3086, %v3091
      %v3096 = vrsqrt.pop %v2992
      %v3097 = vmul.f32 %v3096, %v2992
      %v3098 = vmul.f32 %v3097, %v3096
      %v3099 = vmul.f32 0.5, %v3098
      %v3100 = vsub.f32 1.5, %v3099
      %v3101 = vmul.f32 %v3096, %v3100
      %vm3102 = vweird.f32 %v2992
      %vm3103 = vweird.f32 %v3096
      %vm3104 = vmor %vm3102, %vm3103
      %v3105 = vsel %vm3104, %v3096, %v3101
      %v3106 = vrsqrt.pop %v2993
      %v3107 = vmul.f32 %v3106, %v2993
      %v3108 = vmul.f32 %v3107, %v3106
      %v3109 = vmul.f32 0.5, %v3108
      %v3110 = vsub.f32 1.5, %v3109
      %v3111 = vmul.f32 %v3106, %v3110
      %vm3112 = vweird.f32 %v2993
      %vm3113 = vweird.f32 %v3106
      %vm3114 = vmor %vm3112, %vm3113
      %v3115 = vsel %vm3114, %v3106, %v3111
      %v3116 = vrsqrt.pop %v2994
      %v3117 = vmul.f32 %v3116, %v2994
      %v3118 = vmul.f32 %v3117, %v3116
      %v3119 = vmul.f32 0.5, %v3118
      %v3120 = vsub.f32 1.5, %v3119
      %v3121 = vmul.f32 %v3116, %v3120
      %vm3122 = vweird.f32 %v2994
      %vm3123 = vweird.f32 %v3116
      %vm3124 = vmor %vm3122, %vm3123
      %v3125 = vsel %vm3124, %v3116, %v3121
      %v3126 = vrsqrt.pop %v2995
      %v3127 = vmul.f32 %v3126, %v2995
      %v3128 = vmul.f32 %v3127, %v3126
      %v3129 = vmul.f32 0.5, %v3128
      %v3130 = vsub.f32 1.5, %v3129
      %v3131 = vmul.f32 %v3126, %v3130
      %vm3132 = vweird.f32 %v2995
      %vm3133 = vweird.f32 %v3126
      %vm3134 = vmor %vm3132, %vm3133
      %v3135 = vsel %vm3134, %v3126, %v3131
      %v3136 = vld [vmem:[%s262] sm:$0xff]
      %v3137 = vld [vmem:[%s262 + $0x8] sm:$0xff]
      %v3138 = vld [vmem:[%s262 + $0x10] sm:$0xff]
      %v3139 = vld [vmem:[%s262 + $0x18] sm:$0xff]
      %v3140 = vld [vmem:[%s262 + $0x20] sm:$0xff]
      %v3141 = vld [vmem:[%s262 + $0x28] sm:$0xff]
      %v3142 = vld [vmem:[%s262 + $0x30] sm:$0xff]
      %v3143 = vld [vmem:[%s262 + $0x38] sm:$0xff]
      %v3144 = vld [vmem:[%s262 + $0x40] sm:$0xff]
      %v3145 = vld [vmem:[%s262 + $0x48] sm:$0xff]
      %v3146 = vld [vmem:[%s262 + $0x50] sm:$0xff]
      %v3147 = vld [vmem:[%s262 + $0x58] sm:$0xff]
      %v3148 = vld [vmem:[%s262 + $0x60] sm:$0xff]
      %v3149 = vld [vmem:[%s262 + $0x68] sm:$0xff]
      %v3150 = vmul.f32 %v3136, %v3005
      %v3151 = vmul.f32 %v3137, %v3015
      %v3152 = vmul.f32 %v3138, %v3025
      %v3153 = vmul.f32 %v3139, %v3035
      %v3154 = vmul.f32 %v3140, %v3045
      %v3155 = vmul.f32 %v3141, %v3055
      %v3156 = vmul.f32 %v3142, %v3065
      %v3157 = vmul.f32 %v3143, %v3075
      %v3158 = vmul.f32 %v3144, %v3085
      %v3159 = vmul.f32 %v3145, %v3095
      %v3160 = vmul.f32 %v3146, %v3105
      %v3161 = vmul.f32 %v3147, %v3115
      %v3162 = vmul.f32 %v3148, %v3125
      %v3163 = vmul.f32 %v3149, %v3135
      %v3164 = vld [vmem:[%s268] sm:$0xff]
      %v3165 = vld [vmem:[%s268 + $0x8] sm:$0xff]
      %v3166 = vld [vmem:[%s268 + $0x10] sm:$0xff]
      %v3167 = vld [vmem:[%s268 + $0x18] sm:$0xff]
      %v3168 = vld [vmem:[%s268 + $0x20] sm:$0xff]
      %v3169 = vld [vmem:[%s268 + $0x28] sm:$0xff]
      %v3170 = vld [vmem:[%s268 + $0x30] sm:$0xff]
      %v3171 = vld [vmem:[%s268 + $0x38] sm:$0xff]
      %v3172 = vld [vmem:[%s268 + $0x40] sm:$0xff]
      %v3173 = vld [vmem:[%s268 + $0x48] sm:$0xff]
      %v3174 = vld [vmem:[%s268 + $0x50] sm:$0xff]
      %v3175 = vld [vmem:[%s268 + $0x58] sm:$0xff]
      %v3176 = vld [vmem:[%s268 + $0x60] sm:$0xff]
      %v3177 = vld [vmem:[%s268 + $0x68] sm:$0xff]
      %v3178 = vmul.f32 %v3150, %v2912
      %v3179 = vmul.f32 %v3151, %v2913
      %v3180 = vmul.f32 %v3152, %v2914
      %v3181 = vmul.f32 %v3153, %v2915
      %v3182 = vmul.f32 %v3154, %v2916
      %v3183 = vmul.f32 %v3155, %v2917
      %v3184 = vmul.f32 %v3156, %v2918
      %v3185 = vmul.f32 %v3157, %v2919
      %v3186 = vmul.f32 %v3158, %v2920
      %v3187 = vmul.f32 %v3159, %v2921
      %v3188 = vmul.f32 %v3160, %v2922
      %v3189 = vmul.f32 %v3161, %v2923
      %v3190 = vmul.f32 %v3162, %v2924
      %v3191 = vmul.f32 %v3163, %v2925
      %v3192 = vsub.f32 %v3164, %v3178
      %v3193 = vsub.f32 %v3165, %v3179
      %v3194 = vsub.f32 %v3166, %v3180
      %v3195 = vsub.f32 %v3167, %v3181
      %v3196 = vsub.f32 %v3168, %v3182
      %v3197 = vsub.f32 %v3169, %v3183
      %v3198 = vsub.f32 %v3170, %v3184
      %v3199 = vsub.f32 %v3171, %v3185
      %v3200 = vsub.f32 %v3172, %v3186
      %v3201 = vsub.f32 %v3173, %v3187
      %v3202 = vsub.f32 %v3174, %v3188
      %v3203 = vsub.f32 %v3175, %v3189
      %v3204 = vsub.f32 %v3176, %v3190
      %v3205 = vsub.f32 %v3177, %v3191
      %3207 = vset.pattern.permute.xlu0 0
      %3208 = vperm.xlu0 %3207, %v3150
      %v3209 = vpop.permute.xlu0 %3208
      %3212 = vset.pattern.permute.xlu0 0
      %3213 = vperm.xlu0 %3212, %v3151
      %v3214 = vpop.permute.xlu0 %3213
      %3217 = vset.pattern.permute.xlu0 0
      %3218 = vperm.xlu0 %3217, %v3152
      %v3219 = vpop.permute.xlu0 %3218
      %3222 = vset.pattern.permute.xlu0 0
      %3223 = vperm.xlu0 %3222, %v3153
      %v3224 = vpop.permute.xlu0 %3223
      %3227 = vset.pattern.permute.xlu0 0
      %3228 = vperm.xlu0 %3227, %v3154
      %v3229 = vpop.permute.xlu0 %3228
      %3232 = vset.pattern.permute.xlu0 0
      %3233 = vperm.xlu0 %3232, %v3155
      %v3234 = vpop.permute.xlu0 %3233
      %3237 = vset.pattern.permute.xlu0 0
      %3238 = vperm.xlu0 %3237, %v3156
      %v3239 = vpop.permute.xlu0 %3238
      %3242 = vset.pattern.permute.xlu0 0
      %3243 = vperm.xlu0 %3242, %v3157
      %v3244 = vpop.permute.xlu0 %3243
      %3247 = vset.pattern.permute.xlu0 0
      %3248 = vperm.xlu0 %3247, %v3158
      %v3249 = vpop.permute.xlu0 %3248
      %3252 = vset.pattern.permute.xlu0 0
      %3253 = vperm.xlu0 %3252, %v3159
      %v3254 = vpop.permute.xlu0 %3253
      %3257 = vset.pattern.permute.xlu0 0
      %3258 = vperm.xlu0 %3257, %v3160
      %v3259 = vpop.permute.xlu0 %3258
      %3262 = vset.pattern.permute.xlu0 0
      %3263 = vperm.xlu0 %3262, %v3161
      %v3264 = vpop.permute.xlu0 %3263
      %3267 = vset.pattern.permute.xlu0 0
      %3268 = vperm.xlu0 %3267, %v3162
      %v3269 = vpop.permute.xlu0 %3268
      %3272 = vset.pattern.permute.xlu0 0
      %3273 = vperm.xlu0 %3272, %v3163
      %v3274 = vpop.permute.xlu0 %3273
      %v3276 = vmul.f32 %v3209, %v2253
      %v3277 = vmul.f32 %v3209, %v2737
      %v3278 = vmul.f32 %v3214, %v2255
      %v3279 = vmul.f32 %v3214, %v2739
      %v3280 = vmul.f32 %v3219, %v2258
      %v3281 = vmul.f32 %v3219, %v2742
      %v3282 = vmul.f32 %v3224, %v2260
      %v3283 = vmul.f32 %v3224, %v2744
      %v3284 = vmul.f32 %v3229, %v2263
      %v3285 = vmul.f32 %v3229, %v2747
      %v3286 = vmul.f32 %v3234, %v2265
      %v3287 = vmul.f32 %v3234, %v2749
      %v3288 = vmul.f32 %v3239, %v2268
      %v3289 = vmul.f32 %v3239, %v2752
      %v3290 = vmul.f32 %v3244, %v2270
      %v3291 = vmul.f32 %v3244, %v2754
      %v3292 = vmul.f32 %v3249, %v2273
      %v3293 = vmul.f32 %v3249, %v2757
      %v3294 = vmul.f32 %v3254, %v2275
      %v3295 = vmul.f32 %v3254, %v2759
      %v3296 = vmul.f32 %v3259, %v2278
      %v3297 = vmul.f32 %v3259, %v2762
      %v3298 = vmul.f32 %v3264, %v2280
      %v3299 = vmul.f32 %v3264, %v2764
      %v3300 = vmul.f32 %v3269, %v2283
      %v3301 = vmul.f32 %v3269, %v2767
      %v3302 = vmul.f32 %v3274, %v2285
      %v3303 = vmul.f32 %v3274, %v2769
      %3305 = vset.pattern.permute.xlu0 0
      %3306 = vperm.xlu0 %3305, %v3192
      %v3307 = vpop.permute.xlu0 %3306
      %3310 = vset.pattern.permute.xlu0 0
      %3311 = vperm.xlu0 %3310, %v3193
      %v3312 = vpop.permute.xlu0 %3311
      %3315 = vset.pattern.permute.xlu0 0
      %3316 = vperm.xlu0 %3315, %v3194
      %v3317 = vpop.permute.xlu0 %3316
      %3320 = vset.pattern.permute.xlu0 0
      %3321 = vperm.xlu0 %3320, %v3195
      %v3322 = vpop.permute.xlu0 %3321
      %3325 = vset.pattern.permute.xlu0 0
      %3326 = vperm.xlu0 %3325, %v3196
      %v3327 = vpop.permute.xlu0 %3326
      %3330 = vset.pattern.permute.xlu0 0
      %3331 = vperm.xlu0 %3330, %v3197
      %v3332 = vpop.permute.xlu0 %3331
      %3335 = vset.pattern.permute.xlu0 0
      %3336 = vperm.xlu0 %3335, %v3198
      %v3337 = vpop.permute.xlu0 %3336
      %3340 = vset.pattern.permute.xlu0 0
      %3341 = vperm.xlu0 %3340, %v3199
      %v3342 = vpop.permute.xlu0 %3341
      %3345 = vset.pattern.permute.xlu0 0
      %3346 = vperm.xlu0 %3345, %v3200
      %v3347 = vpop.permute.xlu0 %3346
      %3350 = vset.pattern.permute.xlu0 0
      %3351 = vperm.xlu0 %3350, %v3201
      %v3352 = vpop.permute.xlu0 %3351
      %3355 = vset.pattern.permute.xlu0 0
      %3356 = vperm.xlu0 %3355, %v3202
      %v3357 = vpop.permute.xlu0 %3356
      %3360 = vset.pattern.permute.xlu0 0
      %3361 = vperm.xlu0 %3360, %v3203
      %v3362 = vpop.permute.xlu0 %3361
      %3365 = vset.pattern.permute.xlu0 0
      %3366 = vperm.xlu0 %3365, %v3204
      %v3367 = vpop.permute.xlu0 %3366
      %3370 = vset.pattern.permute.xlu0 0
      %3371 = vperm.xlu0 %3370, %v3205
      %v3372 = vpop.permute.xlu0 %3371
      %v3374 = vadd.f32 %v3276, %v3307
      %v3375 = vadd.f32 %v3277, %v3307
      %v3376 = vadd.f32 %v3278, %v3312
      %v3377 = vadd.f32 %v3279, %v3312
      %v3378 = vadd.f32 %v3280, %v3317
      %v3379 = vadd.f32 %v3281, %v3317
      %v3380 = vadd.f32 %v3282, %v3322
      %v3381 = vadd.f32 %v3283, %v3322
      %v3382 = vadd.f32 %v3284, %v3327
      %v3383 = vadd.f32 %v3285, %v3327
      %v3384 = vadd.f32 %v3286, %v3332
      %v3385 = vadd.f32 %v3287, %v3332
      %v3386 = vadd.f32 %v3288, %v3337
      %v3387 = vadd.f32 %v3289, %v3337
      %v3388 = vadd.f32 %v3290, %v3342
      %v3389 = vadd.f32 %v3291, %v3342
      %v3390 = vadd.f32 %v3292, %v3347
      %v3391 = vadd.f32 %v3293, %v3347
      %v3392 = vadd.f32 %v3294, %v3352
      %v3393 = vadd.f32 %v3295, %v3352
      %v3394 = vadd.f32 %v3296, %v3357
      %v3395 = vadd.f32 %v3297, %v3357
      %v3396 = vadd.f32 %v3298, %v3362
      %v3397 = vadd.f32 %v3299, %v3362
      %v3398 = vadd.f32 %v3300, %v3367
      %v3399 = vadd.f32 %v3301, %v3367
      %v3400 = vadd.f32 %v3302, %v3372
      %v3401 = vadd.f32 %v3303, %v3372
      %3402 = vst [vmem:[%s275] sm:$0xff] %v3374
      %3403 = vst.msk [vmem:[%s275 + $0x8] sm:$0xff] %vm2771, %v3375
      %3404 = vst [vmem:[%s275 + $0x10] sm:$0xff] %v3376
      %3405 = vst.msk [vmem:[%s275 + $0x18] sm:$0xff] %vm2771, %v3377
      %3406 = vst [vmem:[%s275 + $0x20] sm:$0xff] %v3378
      %3407 = vst.msk [vmem:[%s275 + $0x28] sm:$0xff] %vm2771, %v3379
      %3408 = vst [vmem:[%s275 + $0x30] sm:$0xff] %v3380
      %3409 = vst.msk [vmem:[%s275 + $0x38] sm:$0xff] %vm2771, %v3381
      %3410 = vst [vmem:[%s275 + $0x40] sm:$0xff] %v3382
      %3411 = vst.msk [vmem:[%s275 + $0x48] sm:$0xff] %vm2771, %v3383
      %3412 = vst [vmem:[%s275 + $0x50] sm:$0xff] %v3384
      %3413 = vst.msk [vmem:[%s275 + $0x58] sm:$0xff] %vm2771, %v3385
      %3414 = vst [vmem:[%s275 + $0x60] sm:$0xff] %v3386
      %3415 = vst.msk [vmem:[%s275 + $0x68] sm:$0xff] %vm2771, %v3387
      %3416 = vst [vmem:[%s275 + $0x70] sm:$0xff] %v3388
      %3417 = vst.msk [vmem:[%s275 + $0x78] sm:$0xff] %vm2771, %v3389
      %3418 = vst [vmem:[%s275 + $0x80] sm:$0xff] %v3390
      %3419 = vst.msk [vmem:[%s275 + $0x88] sm:$0xff] %vm2771, %v3391
      %3420 = vst [vmem:[%s275 + $0x90] sm:$0xff] %v3392
      %3421 = vst.msk [vmem:[%s275 + $0x98] sm:$0xff] %vm2771, %v3393
      %3422 = vst [vmem:[%s275 + $0xa0] sm:$0xff] %v3394
      %3423 = vst.msk [vmem:[%s275 + $0xa8] sm:$0xff] %vm2771, %v3395
      %3424 = vst [vmem:[%s275 + $0xb0] sm:$0xff] %v3396
      %3425 = vst.msk [vmem:[%s275 + $0xb8] sm:$0xff] %vm2771, %v3397
      %3426 = vst [vmem:[%s275 + $0xc0] sm:$0xff] %v3398
      %3427 = vst.msk [vmem:[%s275 + $0xc8] sm:$0xff] %vm2771, %v3399
      %3428 = vst [vmem:[%s275 + $0xd0] sm:$0xff] %v3400
      %3429 = vst.msk [vmem:[%s275 + $0xd8] sm:$0xff] %vm2771, %v3401
      %s3430 = smul.u32 14, %s16
      %p3431 = scmp.lt.s32.totalorder %s3430, 27
      %s3432 = scalar_select %p3431, %s3430, 27
      %s3433 = smul.addr %s3432, 2
      %s3434 = smul.addr %s3433, 8
      %s3435 = scalar_lea.vmem %s5, %s3434
      // Predicated region
      $region41: #{tpu_custom_call.1} parent=39 // pred_check
        %p3436 = pneg %p154
      $region42: #{tpu_custom_call.1} parent=39 // pred_check_branch
        %3438 = sbr.rel (%p3436) target = $region44
      $region43: #{tpu_custom_call.1} parent=39 // pred_region
        %s3439 = smul.u32 14, %s16
      $region44: #{tpu_custom_call.1} parent=39 // pred_fallthru
        _
    $region40: #{tpu_custom_call.1} parent=5 // pred_fallthru
      _
    %p3440 = scmp.le.s32.totalorder 2, %s11
    // Predicated region
    $region45: #{tpu_custom_call.1} parent=5 // pred_check
      %p3441 = pneg %p3440
    $region46: #{tpu_custom_call.1} parent=5 // pred_check_branch
      %3443 = sbr.rel (%p3441) target = $region48
    $region47: #{tpu_custom_call.1} parent=5 // pred_region
      %s3444 = ssub.s32 %s11, 2
      // Predicated region
      $region49: #{tpu_custom_call.1} parent=47 // pred_check
        %p3445 = pneg %p160
      $region50: #{tpu_custom_call.1} parent=47 // pred_check_branch
        %3447 = sbr.rel (%p3445) target = $region52
      $region51: #{tpu_custom_call.1} parent=47 // pred_region
        %s3448 = smul.u32 14, %s17
        %p3449 = scmp.lt.s32.totalorder %s3448, 27
        %s3450 = scalar_select %p3449, %s3448, 27
        %s3451 = smul.addr %s3450, 2
        %s3452 = smul.addr %s3451, 8
        %s3453 = scalar_lea.vmem %s5, %s3452
      $region52: #{tpu_custom_call.1} parent=47 // pred_fallthru
        _
    $region48: #{tpu_custom_call.1} parent=5 // pred_fallthru
      _
  $region6: #{tpu_custom_call.1} parent=0 // loop_footer
    %s15 = sadd.s32 1, %s11
  $region7: #{tpu_custom_call.1} parent=0 // loop_footer_branch
    %10 = sbr.rel target = $region3
  $region8: #{tpu_custom_call.1} parent=0 // loop_exit
    _

</llo_original>
